<compile_context>
chip_gen: v7x
topology: tpu7x:2x2x1
jax: 0.10.0
libtpu: 0.0.40
codegen_flags: <defaults>
</compile_context>

<pallas_src>
import numpy as np

import jax
import jax.numpy as jnp
from jax.experimental import pallas as pl
from jax.experimental.pallas import tpu as pltpu


# ----------------------------------------------------------------------------
# Tiling / call helpers
# ----------------------------------------------------------------------------
_TILE_ROWS = 8192                 # max rows per grid step (multi-MiB steps)
_MIN_ALIGN = 16                   # row alignment (bf16 sublane packing)
_SPLIT_MIN = 256                  # above this, keep >= 2 blocks (v7x megacore)
_VMEM_LIMIT = 32 * 1024 * 1024    # explicit budget, safe on v5e/v6e/v7x
_EPS = 1e-5


def _round_up(x, m):
    return ((x + m - 1) // m) * m


def _choose_tile(n):
    """Row tile: big steps, but keep the grid at >= 2 blocks when possible."""
    if n >= 2 * _TILE_ROWS:
        return _TILE_ROWS
    if n > _SPLIT_MIN:
        return min(_TILE_ROWS, _round_up((n + 1) // 2, _MIN_ALIGN))
    return _round_up(max(n, 1), _MIN_ALIGN)


def _pad_rows(x, n_pad):
    n = x.shape[0]
    if n == n_pad:
        return x
    return jnp.pad(x, ((0, n_pad - n), (0, 0)))


def _call_rowwise(kernel, rows, consts, out_dims, out_dtypes, tile=None):
    """Row-tiled pallas_call: rows tiled over a parallel grid, consts
    (weights / biases / LN affine) VMEM-resident across the grid.
    Returns PADDED outputs (n_pad rows); callers slice only when needed."""
    n = rows[0].shape[0]
    if tile is None:
        tile = _choose_tile(n)
    n_pad = _round_up(n, tile)
    grid = (n_pad // tile,)
    rows = [_pad_rows(r, n_pad) for r in rows]

    in_specs = [pl.BlockSpec((tile, r.shape[1]), lambda i: (i, 0)) for r in rows]
    in_specs += [pl.BlockSpec(tuple(c.shape), lambda i: (0, 0)) for c in consts]

    out_shape = tuple(jax.ShapeDtypeStruct((n_pad, d), dt)
                      for d, dt in zip(out_dims, out_dtypes))
    out_specs = tuple(pl.BlockSpec((tile, d), lambda i: (i, 0)) for d in out_dims)
    single = len(out_dims) == 1

    return pl.pallas_call(
        kernel,
        grid=grid,
        in_specs=in_specs,
        out_specs=out_specs[0] if single else out_specs,
        out_shape=out_shape[0] if single else out_shape,
        compiler_params=pltpu.CompilerParams(
            dimension_semantics=("parallel",),
            vmem_limit_bytes=_VMEM_LIMIT),
    )(*rows, *consts)


# ----------------------------------------------------------------------------
# Pallas kernels (row-tiled; bf16 MXU operands, f32 accumulate/elementwise)
# ----------------------------------------------------------------------------
def _bf(x):
    return x.astype(jnp.bfloat16)


def _silu(y):                       # f32 elementwise (EUP sigmoid)
    return y * jax.nn.sigmoid(y)


def _ln(y, g, b):                   # per-row LayerNorm (PyG mode='node')
    mean = jnp.mean(y, axis=-1, keepdims=True)
    var = jnp.mean(jnp.square(y - mean), axis=-1, keepdims=True)
    return (y - mean) * jax.lax.rsqrt(var + _EPS) * g + b


def _linear_kernel(x_ref, w_ref, b_ref, o_ref):
    y = jnp.dot(_bf(x_ref[...]), w_ref[...],
                preferred_element_type=jnp.float32) + b_ref[...]
    o_ref[...] = y.astype(o_ref.dtype)


def _linear_ln_kernel(x_ref, w_ref, b_ref, g_ref, bta_ref, o_ref):
    y = jnp.dot(_bf(x_ref[...]), w_ref[...],
                preferred_element_type=jnp.float32) + b_ref[...]
    o_ref[...] = _ln(y, g_ref[...], bta_ref[...]).astype(o_ref.dtype)


def _layernorm_kernel(x_ref, g_ref, bta_ref, o_ref):
    o_ref[...] = _ln(x_ref[...].astype(jnp.float32),
                     g_ref[...], bta_ref[...]).astype(o_ref.dtype)


def _edge_attr_kernel(hp_ref, w1_ref, b1_ref, w2_ref, b2_ref,
                      w3_ref, b3_ref, g_ref, bta_ref, o_ref):
    """Unpooling edge MLP (relu, relu, linear) fused with bn_edge LayerNorm.
    LHS is the single interleaved [T, 2H] gather; W1 is unsplit (2H x H)."""
    f32 = jnp.float32
    y = jnp.dot(hp_ref[...], w1_ref[...], preferred_element_type=f32)
    y = y + b1_ref[...]
    y = jnp.maximum(y, 0.0)
    y = jnp.dot(_bf(y), w2_ref[...], preferred_element_type=f32) + b2_ref[...]
    y = jnp.maximum(y, 0.0)
    y = jnp.dot(_bf(y), w3_ref[...], preferred_element_type=f32) + b3_ref[...]
    o_ref[...] = _ln(y, g_ref[...], bta_ref[...]).astype(o_ref.dtype)


def _egcl_edge_kernel(hp_ref, ea_ref, cd_ref,
                      w1p_ref, w1r_ref, w1e_ref, b1_ref, w2_ref, b2_ref,
                      wc1_ref, bc1_ref, wc2r_ref,
                      m_ref, t_ref):
    """EGCL edge MLP (silu, silu) fused with the coord head.  radial is
    computed in-kernel from coord_diff; the [E,1] coord weight is computed
    and consumed (trans = coord_diff * w_ij) entirely in VMEM."""
    f32 = jnp.float32
    cd = cd_ref[...]
    radial = jnp.sum(cd * cd, axis=-1, keepdims=True)          # XLU reduce
    y = jnp.dot(hp_ref[...], w1p_ref[...], preferred_element_type=f32)
    y = y + jnp.dot(ea_ref[...], w1e_ref[...], preferred_element_type=f32)
    y = y + radial * w1r_ref[...]          # [T,1] * [1,H] broadcast (VPU)
    y = y + b1_ref[...]
    y = _silu(y)
    y = jnp.dot(_bf(y), w2_ref[...], preferred_element_type=f32) + b2_ref[...]
    m = _silu(y)
    m_ref[...] = m                          # f32 out: no cast pass before scatter

    c = jnp.dot(_bf(m), wc1_ref[...], preferred_element_type=f32) + bc1_ref[...]
    c = _silu(c)
    # last coord layer (h -> 1, no bias) as a lane reduction (XLU), not a
    # degenerate width-1 MXU pass / width-1 HBM store
    w_ij = jnp.sum(c * wc2r_ref[...], axis=-1, keepdims=True)
    t_ref[...] = cd * w_ij


def _egcl_node_kernel(h_ref, ma_ref,
                      w1h_ref, w1m_ref, b1_ref, w2_ref, b2_ref, o_ref):
    """EGCL node MLP (silu, linear) with the residual add fused in-kernel."""
    f32 = jnp.float32
    y = jnp.dot(_bf(h_ref[...]), w1h_ref[...], preferred_element_type=f32)
    y = y + jnp.dot(_bf(ma_ref[...]), w1m_ref[...], preferred_element_type=f32)
    y = y + b1_ref[...]
    y = _silu(y)
    y = jnp.dot(_bf(y), w2_ref[...], preferred_element_type=f32) + b2_ref[...]
    o_ref[...] = h_ref[...] + y


# ----------------------------------------------------------------------------
# EGNN (canonical Satorras E(n)-GNN: 4 EGCL layers, SiLU, residual)
# TODO(synk): the original EGNN class source was not provided; this is the
# standard EGCL formulation matching its constructor signature.
# ----------------------------------------------------------------------------
def egcl_forward(lp, h, x, pair_idx, row_seg, inv_deg, edge_attr,
                 n_pad, node_tile, edge_tile, hidden_dim):
    e_pad = row_seg.shape[0]
    coords_dim = x.shape[1]

    # single interleaved gather -> [E, 2H] (row i = [h[row_i] | h[col_i]])
    hb = h.astype(jnp.bfloat16)
    h_pair = jnp.take(hb, pair_idx, axis=0).reshape(e_pad, 2 * hidden_dim)
    x_pair = jnp.take(x, pair_idx, axis=0).reshape(e_pad, 2, coords_dim)
    coord_diff = x_pair[:, 0, :] - x_pair[:, 1, :]

    m_ij, trans = _call_rowwise(
        _egcl_edge_kernel,
        [h_pair, edge_attr, coord_diff],
        lp["edge"],
        [hidden_dim, coords_dim],
        [jnp.float32, jnp.float32],
        tile=edge_tile)

    # coordinate update (mean aggregation; degree precomputed, edges sorted)
    agg = jax.ops.segment_sum(trans, row_seg, num_segments=n_pad,
                              indices_are_sorted=True)
    x = x + agg * inv_deg

    # node update (sum aggregation, residual fused in kernel)
    m_agg = jax.ops.segment_sum(m_ij, row_seg, num_segments=n_pad,
                                indices_are_sorted=True)
    h = _call_rowwise(_egcl_node_kernel, [h, m_agg], lp["node"],
                      [hidden_dim], [jnp.float32], tile=node_tile)
    return h, x


def egnn_forward(p, bn_h, h, x, pair_idx, row_seg, inv_deg, edge_attr,
                 n_pad, node_tile, edge_tile, hidden_dim):
    h = _call_rowwise(_linear_kernel, [h], p["emb_in"],
                      [hidden_dim], [jnp.float32], tile=node_tile)
    for lp in p["layers"]:
        h, x = egcl_forward(lp, h, x, pair_idx, row_seg, inv_deg, edge_attr,
                            n_pad, node_tile, edge_tile, hidden_dim)
    # emb_out fused with bn_h LayerNorm
    h = _call_rowwise(_linear_ln_kernel, [h], p["emb_out"] + bn_h,
                      [hidden_dim], [jnp.float32], tile=node_tile)
    return h, x


# ----------------------------------------------------------------------------
# EGNNUnPooling forward
# ----------------------------------------------------------------------------
STRIDE, KERNEL, PADDING, OUT_PADDING = 2, 3, 1, 1


def egnn_unpooling_forward(p, h, coords, batch, hidden_dim):
    B = int(batch[-1]) + 1
    num_node = h.shape[0] // B
    coords_dim = coords.shape[-1]
    aug_size = num_node * STRIDE - 1 + 2 * (KERNEL - PADDING - 1) + OUT_PADDING
    out_size = ((num_node - 1) * STRIDE - 2 * PADDING + (KERNEL - 1)
                + OUT_PADDING + 1)

    # dense "transposed conv" averaging matrix (f64 coefficients, cast to f32)
    M_np = np.zeros((out_size, aug_size), np.float64)
    for i in range(out_size):
        M_np[i, i:i + KERNEL] = 1.0 / KERNEL
    M = jnp.asarray(M_np.astype(np.float32))

    h = h.reshape(B, num_node, hidden_dim)
    coords = coords.reshape(B, num_node, coords_dim)

    def augment(x):
        avg = 0.5 * (x[:, :-1, :] + x[:, 1:, :])
        tmp = jnp.stack([x[:, :-1, :], avg], axis=2)
        tmp = tmp.reshape(B, 2 * (num_node - 1), x.shape[-1])
        return jnp.concatenate(
            [x[:, 0:1, :], tmp, jnp.tile(x[:, -1:, :], (1, 3, 1))], axis=1)

    coords = augment(coords)                    # [B, aug_size, C]
    h = augment(h)                              # [B, aug_size, H]

    # tiny banded matmul: far too small for the MXU -> leave to XLA
    coords_pool = jnp.einsum("oa,bac->boc", M, coords)   # [B, out_size, C]
    h_pool = jnp.einsum("oa,bac->boc", M, h)             # [B, out_size, H]

    # ---- static graph construction (numpy; mirrors complete_graph + M>0) ----
    n_total = aug_size + out_size
    num_nodes = B * n_total
    src, dst = np.meshgrid(np.arange(aug_size), np.arange(aug_size),
                           indexing="ij")
    keep = src != dst
    cg = np.stack([src[keep], dst[keep]], axis=0)
    rr = np.repeat(np.arange(out_size), KERNEL) + aug_size
    cc = (np.repeat(np.arange(out_size), KERNEL)
          + np.tile(np.arange(KERNEL), out_size))
    extra = np.concatenate([np.stack([rr, cc]), np.stack([cc, rr])], axis=1)
    per_graph = np.concatenate([cg, extra], axis=1)
    edge_index = np.concatenate(
        [per_graph + b * n_total for b in range(B)], axis=1)
    # sort edges by aggregation row -> sorted segment reductions
    order = np.argsort(edge_index[0], kind="stable")
    edge_index = edge_index[:, order]
    E = edge_index.shape[1]

    # tiles: edges and nodes each padded ONCE; all layers reuse the padding
    edge_tile = _choose_tile(E)
    E_pad = _round_up(E, edge_tile)
    node_tile = _choose_tile(num_nodes)
    # always leave >= 1 padding node slot so padded edges scatter harmlessly
    N_pad = _round_up(num_nodes + 1, node_tile)
    pad_e = E_pad - E

    row_np = np.concatenate([edge_index[0], np.zeros(pad_e, np.int64)])
    col_np = np.concatenate([edge_index[1], np.zeros(pad_e, np.int64)])
    seg_np = np.concatenate([edge_index[0],
                             np.full(pad_e, num_nodes, np.int64)])
    pair_np = np.stack([row_np, col_np], axis=1).reshape(-1)   # interleaved

    pair_idx = jnp.asarray(pair_np, jnp.int32)      # [2*E_pad]
    row_seg = jnp.asarray(seg_np, jnp.int32)        # [E_pad]

    deg = np.bincount(edge_index[0], minlength=num_nodes).astype(np.float32)
    inv_np = np.ones((N_pad, 1), np.float32)
    inv_np[:num_nodes, 0] = 1.0 / np.maximum(deg, 1.0)
    inv_deg = jnp.asarray(inv_np)

    # node tables, padded once and kept padded through the whole EGNN
    h_full = _pad_rows(
        jnp.concatenate([h, h_pool], axis=1).reshape(-1, hidden_dim), N_pad)
    coords_full = _pad_rows(
        jnp.concatenate([coords, coords_pool], axis=1).reshape(-1, coords_dim),
        N_pad)

    # edge features: single [E,2H] gather -> fused MLP + LayerNorm
    hb = h_full.astype(jnp.bfloat16)
    h_pair = jnp.take(hb, pair_idx, axis=0).reshape(E_pad, 2 * hidden_dim)
    edge_attr = _call_rowwise(_edge_attr_kernel, [h_pair], p["edge_attr"],
                              [hidden_dim], [jnp.bfloat16], tile=edge_tile)

    h_out, coords_out = egnn_forward(
        p["egnn"], p["bn_h"], h_full, coords_full, pair_idx, row_seg, inv_deg,
        edge_attr, N_pad, node_tile, edge_tile, hidden_dim)

    h_out = h_out[:num_nodes].reshape(B, n_total, hidden_dim)
    coords_out = coords_out[:num_nodes].reshape(B, n_total, coords_dim)
    h_pool_out = h_out[:, aug_size:, :].reshape(-1, hidden_dim)
    coords_pool_out = coords_out[:, aug_size:, :].reshape(-1, coords_dim)
    return h_pool_out, coords_pool_out


def decoder_transpose_forward(p, coords, h, batch, hidden_dim):
    for up, bn in zip(p["unpooling"], p["bn"]):
        h, coords = egnn_unpooling_forward(up, h, coords, batch, hidden_dim)
        n = h.shape[0]
        h = _call_rowwise(_layernorm_kernel, [h], bn,
                          [hidden_dim], [jnp.float32])[:n]
    return coords, h


# ----------------------------------------------------------------------------
# Deterministic parameter initialisation (PyTorch-style uniform bounds),
# stored in kernel-ready form: weights bf16 (unsplit pair part of W1),
# biases / LN affine as (1,h) f32 rows.
# ----------------------------------------------------------------------------
def _uinit(key, din, dout, bias=True, scale=1.0):
    kw, kb = jax.random.split(key)
    bound = float(scale) / float(np.sqrt(din))
    w = jax.random.uniform(kw, (din, dout), jnp.float32, -bound, bound)
    b = (jax.random.uniform(kb, (dout,), jnp.float32, -bound, bound)
         if bias else jnp.zeros((dout,), jnp.float32))
    return w, b


def _wrow(b):
    return b.reshape(1, -1).astype(jnp.float32)


def _ln_params(h):
    return [jnp.ones((1, h), jnp.float32), jnp.zeros((1, h), jnp.float32)]


def init_edge_attr_consts(key, h):
    k1, k2, k3 = jax.random.split(key, 3)
    w1, b1 = _uinit(k1, 2 * h, h)
    w2, b2 = _uinit(k2, h, h)
    w3, b3 = _uinit(k3, h, h)
    g, beta = _ln_params(h)
    return [_bf(w1), _wrow(b1), _bf(w2), _wrow(b2),
            _bf(w3), _wrow(b3), g, beta]


def init_egcl(key, h):
    ks = jax.random.split(key, 6)
    we1, be1 = _uinit(ks[0], 3 * h + 1, h)      # [h_row | h_col | radial | e_attr]
    we2, be2 = _uinit(ks[1], h, h)
    wn1, bn1 = _uinit(ks[2], 2 * h, h)          # [h | m_agg]
    wn2, bn2 = _uinit(ks[3], h, h)
    wc1, bc1 = _uinit(ks[4], h, h)
    wc2, _ = _uinit(ks[5], h, 1, bias=False, scale=0.001)
    edge = [_bf(we1[:2 * h]),                                  # pair part (2H,H)
            we1[2 * h:2 * h + 1].astype(jnp.float32),          # radial row, f32
            _bf(we1[2 * h + 1:]),                              # edge_attr (H,H)
            _wrow(be1),
            _bf(we2), _wrow(be2),
            _bf(wc1), _wrow(bc1),
            wc2.reshape(1, h).astype(jnp.float32)]             # coord last layer
    node = [_bf(wn1[:h]), _bf(wn1[h:]), _wrow(bn1), _bf(wn2), _wrow(bn2)]
    return {"edge": edge, "node": node}


def init_egnn(key, h, n_layers=4):
    ks = jax.random.split(key, n_layers + 2)
    wi, bi = _uinit(ks[0], h, h)
    wo, bo = _uinit(ks[1], h, h)
    return {"emb_in": [_bf(wi), _wrow(bi)],
            "emb_out": [_bf(wo), _wrow(bo)],
            "layers": [init_egcl(ks[2 + i], h) for i in range(n_layers)]}


def init_unpooling(key, h):
    k1, k2 = jax.random.split(key)
    return {"edge_attr": init_edge_attr_consts(k1, h),
            "bn_h": _ln_params(h),
            "egnn": init_egnn(k2, h)}


def init_decoder(key, h, layers=1):
    ks = jax.random.split(key, layers)
    return {"unpooling": [init_unpooling(ks[i], h) for i in range(layers)],
            "bn": [_ln_params(h) for _ in range(layers)]}


# ----------------------------------------------------------------------------
if __name__ == "__main__":
    key = jax.random.PRNGKey(0)
    hidden = 32
    B, num_node, coords_dim = 2, 4, 3

    kh, kc, kp = jax.random.split(key, 3)
    h = jax.random.normal(kh, (B * num_node, hidden), jnp.float32)
    coords = jax.random.normal(kc, (B * num_node, coords_dim), jnp.float32)
    batch = jnp.repeat(jnp.arange(B, dtype=jnp.int32), num_node)

    params = init_decoder(kp, hidden, layers=1)
    coords_out, h_out = decoder_transpose_forward(params, coords, h, batch,
                                                  hidden)
    coords_out, h_out = jax.block_until_ready((coords_out, h_out))

    # out_size per graph for num_node=4, stride=2, k=3, pad=1, out_pad=1 is 8
    assert h_out.shape == (B * 8, hidden), h_out.shape
    assert coords_out.shape == (B * 8, coords_dim), coords_out.shape
    assert bool(jnp.all(jnp.isfinite(h_out))) and bool(
        jnp.all(jnp.isfinite(coords_out)))
    print("KERNEL_OK")
</pallas_src>

<mosaic_0001>
module attributes {stable_mosaic.version = 11 : i64} {
  func.func @_edge_attr_kernel(%arg0: i32, %arg1: memref<144x64xbf16, #tpu.memory_space<vmem>>, %arg2: memref<64x32xbf16, #tpu.memory_space<vmem>>, %arg3: memref<1x32xf32, #tpu.memory_space<vmem>>, %arg4: memref<32x32xbf16, #tpu.memory_space<vmem>>, %arg5: memref<1x32xf32, #tpu.memory_space<vmem>>, %arg6: memref<32x32xbf16, #tpu.memory_space<vmem>>, %arg7: memref<1x32xf32, #tpu.memory_space<vmem>>, %arg8: memref<1x32xf32, #tpu.memory_space<vmem>>, %arg9: memref<1x32xf32, #tpu.memory_space<vmem>>, %arg10: memref<144x32xbf16, #tpu.memory_space<vmem>>) attributes {dimension_semantics = [#tpu.dimension_semantics<parallel>], iteration_bounds = array<i64: 2>, scalar_prefetch = 0 : i64, scratch_operands = 0 : i64, tpu.core_type = #tpu.core_type<tc>, window_params = [{transform_indices = @transform_0, window_bounds = array<i64: 144, 64>}, {pipeline_mode = #tpu.pipeline_mode<synchronous>, transform_indices = @transform_1, window_bounds = array<i64: 64, 32>}, {pipeline_mode = #tpu.pipeline_mode<synchronous>, transform_indices = @transform_2, window_bounds = array<i64: 1, 32>}, {pipeline_mode = #tpu.pipeline_mode<synchronous>, transform_indices = @transform_3, window_bounds = array<i64: 32, 32>}, {pipeline_mode = #tpu.pipeline_mode<synchronous>, transform_indices = @transform_4, window_bounds = array<i64: 1, 32>}, {pipeline_mode = #tpu.pipeline_mode<synchronous>, transform_indices = @transform_5, window_bounds = array<i64: 32, 32>}, {pipeline_mode = #tpu.pipeline_mode<synchronous>, transform_indices = @transform_6, window_bounds = array<i64: 1, 32>}, {pipeline_mode = #tpu.pipeline_mode<synchronous>, transform_indices = @transform_7, window_bounds = array<i64: 1, 32>}, {pipeline_mode = #tpu.pipeline_mode<synchronous>, transform_indices = @transform_8, window_bounds = array<i64: 1, 32>}, {transform_indices = @transform_9, window_bounds = array<i64: 144, 32>}]} {
    %c0 = arith.constant 0 : index
    %c0_0 = arith.constant 0 : index
    %0 = vector.load %arg1[%c0, %c0_0] : memref<144x64xbf16, #tpu.memory_space<vmem>>, vector<144x64xbf16>
    %c0_1 = arith.constant 0 : index
    %c0_2 = arith.constant 0 : index
    %1 = vector.load %arg2[%c0_1, %c0_2] : memref<64x32xbf16, #tpu.memory_space<vmem>>, vector<64x32xbf16>
    %cst = arith.constant dense<0.000000e+00> : vector<144x32xf32>
    %2 = tpu.matmul %0, %1, %cst {dimension_numbers = #tpu.dot_dimension_numbers<[1], [0], [0], [1], [0, 0, 1, 1], [], []>} : vector<144x64xbf16>, vector<64x32xbf16>, vector<144x32xf32> -> vector<144x32xf32>
    %c0_3 = arith.constant 0 : index
    %c0_4 = arith.constant 0 : index
    %3 = vector.load %arg3[%c0_3, %c0_4] : memref<1x32xf32, #tpu.memory_space<vmem>>, vector<1x32xf32>
    %4 = vector.broadcast %3 : vector<1x32xf32> to vector<144x32xf32>
    %5 = arith.addf %2, %4 : vector<144x32xf32>
    %cst_5 = arith.constant 0.000000e+00 : f32
    %6 = vector.broadcast %cst_5 : f32 to vector<144x32xf32>
    %7 = arith.maximumf %5, %6 : vector<144x32xf32>
    %8 = arith.truncf %7 : vector<144x32xf32> to vector<144x32xbf16>
    %c0_6 = arith.constant 0 : index
    %c0_7 = arith.constant 0 : index
    %9 = vector.load %arg4[%c0_6, %c0_7] : memref<32x32xbf16, #tpu.memory_space<vmem>>, vector<32x32xbf16>
    %cst_8 = arith.constant dense<0.000000e+00> : vector<144x32xf32>
    %10 = tpu.matmul %8, %9, %cst_8 {dimension_numbers = #tpu.dot_dimension_numbers<[1], [0], [0], [1], [0, 0, 1, 1], [], []>} : vector<144x32xbf16>, vector<32x32xbf16>, vector<144x32xf32> -> vector<144x32xf32>
    %c0_9 = arith.constant 0 : index
    %c0_10 = arith.constant 0 : index
    %11 = vector.load %arg5[%c0_9, %c0_10] : memref<1x32xf32, #tpu.memory_space<vmem>>, vector<1x32xf32>
    %12 = vector.broadcast %11 : vector<1x32xf32> to vector<144x32xf32>
    %13 = arith.addf %10, %12 : vector<144x32xf32>
    %cst_11 = arith.constant 0.000000e+00 : f32
    %14 = vector.broadcast %cst_11 : f32 to vector<144x32xf32>
    %15 = arith.maximumf %13, %14 : vector<144x32xf32>
    %16 = arith.truncf %15 : vector<144x32xf32> to vector<144x32xbf16>
    %c0_12 = arith.constant 0 : index
    %c0_13 = arith.constant 0 : index
    %17 = vector.load %arg6[%c0_12, %c0_13] : memref<32x32xbf16, #tpu.memory_space<vmem>>, vector<32x32xbf16>
    %cst_14 = arith.constant dense<0.000000e+00> : vector<144x32xf32>
    %18 = tpu.matmul %16, %17, %cst_14 {dimension_numbers = #tpu.dot_dimension_numbers<[1], [0], [0], [1], [0, 0, 1, 1], [], []>} : vector<144x32xbf16>, vector<32x32xbf16>, vector<144x32xf32> -> vector<144x32xf32>
    %c0_15 = arith.constant 0 : index
    %c0_16 = arith.constant 0 : index
    %19 = vector.load %arg7[%c0_15, %c0_16] : memref<1x32xf32, #tpu.memory_space<vmem>>, vector<1x32xf32>
    %20 = vector.broadcast %19 : vector<1x32xf32> to vector<144x32xf32>
    %21 = arith.addf %18, %20 : vector<144x32xf32>
    %c0_17 = arith.constant 0 : index
    %c0_18 = arith.constant 0 : index
    %22 = vector.load %arg8[%c0_17, %c0_18] : memref<1x32xf32, #tpu.memory_space<vmem>>, vector<1x32xf32>
    %c0_19 = arith.constant 0 : index
    %c0_20 = arith.constant 0 : index
    %23 = vector.load %arg9[%c0_19, %c0_20] : memref<1x32xf32, #tpu.memory_space<vmem>>, vector<1x32xf32>
    %cst_21 = arith.constant dense<0.000000e+00> : vector<144xf32>
    %24 = vector.multi_reduction <add>, %21, %cst_21 [1] : vector<144x32xf32> to vector<144xf32>
    %25 = vector.shape_cast %24 : vector<144xf32> to vector<144x1xf32>
    %cst_22 = arith.constant 3.200000e+01 : f32
    %26 = vector.broadcast %cst_22 : f32 to vector<144x1xf32>
    %27 = arith.divf %25, %26 : vector<144x1xf32>
    %28 = vector.broadcast %27 : vector<144x1xf32> to vector<144x32xf32>
    %29 = arith.subf %21, %28 : vector<144x32xf32>
    %30 = arith.mulf %29, %29 : vector<144x32xf32>
    %cst_23 = arith.constant dense<0.000000e+00> : vector<144xf32>
    %31 = vector.multi_reduction <add>, %30, %cst_23 [1] : vector<144x32xf32> to vector<144xf32>
    %32 = vector.shape_cast %31 : vector<144xf32> to vector<144x1xf32>
    %cst_24 = arith.constant 3.200000e+01 : f32
    %33 = vector.broadcast %cst_24 : f32 to vector<144x1xf32>
    %34 = arith.divf %32, %33 : vector<144x1xf32>
    %35 = vector.broadcast %27 : vector<144x1xf32> to vector<144x32xf32>
    %36 = arith.subf %21, %35 : vector<144x32xf32>
    %cst_25 = arith.constant 9.99999974E-6 : f32
    %37 = vector.broadcast %cst_25 : f32 to vector<144x1xf32>
    %38 = arith.addf %34, %37 : vector<144x1xf32>
    %39 = math.rsqrt %38 : vector<144x1xf32>
    %40 = vector.broadcast %39 : vector<144x1xf32> to vector<144x32xf32>
    %41 = arith.mulf %36, %40 : vector<144x32xf32>
    %42 = vector.broadcast %22 : vector<1x32xf32> to vector<144x32xf32>
    %43 = arith.mulf %41, %42 : vector<144x32xf32>
    %44 = vector.broadcast %23 : vector<1x32xf32> to vector<144x32xf32>
    %45 = arith.addf %43, %44 : vector<144x32xf32>
    %46 = arith.truncf %45 : vector<144x32xf32> to vector<144x32xbf16>
    %c0_26 = arith.constant 0 : index
    %c0_27 = arith.constant 0 : index
    %47 = vector.load %arg10[%c0_26, %c0_27] : memref<144x32xbf16, #tpu.memory_space<vmem>>, vector<144x32xbf16>
    tpu.vector_store %arg10[%c0_26, %c0_27], %46 {strides = array<i32>} : memref<144x32xbf16, #tpu.memory_space<vmem>>, vector<144x32xbf16>,
    return
  }
  func.func @transform_0(%arg0: i32) -> (i32, i32) {
    %c0_i32 = arith.constant 0 : i32
    %c0_i32_0 = arith.constant 0 : i32
    return %arg0, %c0_i32 : i32, i32
  }
  func.func @transform_1(%arg0: i32) -> (i32, i32) {
    %c0_i32 = arith.constant 0 : i32
    %c0_i32_0 = arith.constant 0 : i32
    %c0_i32_1 = arith.constant 0 : i32
    return %c0_i32, %c0_i32_0 : i32, i32
  }
  func.func @transform_2(%arg0: i32) -> (i32, i32) {
    %c0_i32 = arith.constant 0 : i32
    %c0_i32_0 = arith.constant 0 : i32
    %c0_i32_1 = arith.constant 0 : i32
    return %c0_i32, %c0_i32_0 : i32, i32
  }
  func.func @transform_3(%arg0: i32) -> (i32, i32) {
    %c0_i32 = arith.constant 0 : i32
    %c0_i32_0 = arith.constant 0 : i32
    %c0_i32_1 = arith.constant 0 : i32
    return %c0_i32, %c0_i32_0 : i32, i32
  }
  func.func @transform_4(%arg0: i32) -> (i32, i32) {
    %c0_i32 = arith.constant 0 : i32
    %c0_i32_0 = arith.constant 0 : i32
    %c0_i32_1 = arith.constant 0 : i32
    return %c0_i32, %c0_i32_0 : i32, i32
  }
  func.func @transform_5(%arg0: i32) -> (i32, i32) {
    %c0_i32 = arith.constant 0 : i32
    %c0_i32_0 = arith.constant 0 : i32
    %c0_i32_1 = arith.constant 0 : i32
    return %c0_i32, %c0_i32_0 : i32, i32
  }
  func.func @transform_6(%arg0: i32) -> (i32, i32) {
    %c0_i32 = arith.constant 0 : i32
    %c0_i32_0 = arith.constant 0 : i32
    %c0_i32_1 = arith.constant 0 : i32
    return %c0_i32, %c0_i32_0 : i32, i32
  }
  func.func @transform_7(%arg0: i32) -> (i32, i32) {
    %c0_i32 = arith.constant 0 : i32
    %c0_i32_0 = arith.constant 0 : i32
    %c0_i32_1 = arith.constant 0 : i32
    return %c0_i32, %c0_i32_0 : i32, i32
  }
  func.func @transform_8(%arg0: i32) -> (i32, i32) {
    %c0_i32 = arith.constant 0 : i32
    %c0_i32_0 = arith.constant 0 : i32
    %c0_i32_1 = arith.constant 0 : i32
    return %c0_i32, %c0_i32_0 : i32, i32
  }
  func.func @transform_9(%arg0: i32) -> (i32, i32) {
    %c0_i32 = arith.constant 0 : i32
    %c0_i32_0 = arith.constant 0 : i32
    return %arg0, %c0_i32 : i32, i32
  }
}

</mosaic_0001>

<llo_original>
// kernel: tpu_custom_call.1
$region0: #{tpu_custom_call.1}
  #allocation0 [shape = 'u32[]', space=smem, size = 0x4, offset = 0x4, fixed_abs, tag = 'smem constant byte address 0x4 - core index']
  #allocation1 [shape = 'u32[144,128]{1,0:T(1,128)}', space=vmem, size = 0x12000, scoped, tag = 'internal scratch']
  %s0 = inlined_call_operand.vmem [shape: bf16[288,64], index: 0, kind: input, shape index: {}]
  %s1 = inlined_call_operand.vmem [shape: bf16[64,32], index: 1, kind: input, shape index: {}]
  %s2 = inlined_call_operand.vmem [shape: f32[1,32], index: 2, kind: input, shape index: {}]
  %s3 = inlined_call_operand.vmem [shape: bf16[32,32], index: 3, kind: input, shape index: {}]
  %s4 = inlined_call_operand.vmem [shape: f32[1,32], index: 4, kind: input, shape index: {}]
  %s5 = inlined_call_operand.vmem [shape: bf16[32,32], index: 5, kind: input, shape index: {}]
  %s6 = inlined_call_operand.vmem [shape: f32[1,32], index: 6, kind: input, shape index: {}]
  %s7 = inlined_call_operand.vmem [shape: f32[1,32], index: 7, kind: input, shape index: {}]
  %s8 = inlined_call_operand.vmem [shape: f32[1,32], index: 8, kind: input, shape index: {}]
  %s9 = inlined_call_operand.vmem [shape: bf16[288,32], index: 9, kind: output, shape index: {}]
  %s10 = sld [smem:[#allocation0]]
  $region69: #{tpu_custom_call.1} parent=0
    _
  %s12 = ssub.s32 1, %s10
  %s13 = scalar_select 0, %s12, %s10
  loop: start=0, step=1, limit=4
  $region2: #{tpu_custom_call.1} parent=0 // loop_pre_header
    _
  $region3: #{tpu_custom_call.1} parent=0 // loop_header
    %s15 = sphi 0, %s19
    %p16 = scmp.ge.s32.totalorder %s15, 4
    %s25 = sphi 0, %s27
    %s28 = sphi 0, %s25
    %s29 = sphi 0, %s28
    %s45 = sphi 0, %s29
    %s49 = sphi 0, %s49
    %s51 = sphi 0, %s49
    %s52 = sphi 0, %s51
    %s66 = sphi 0, %s52
    %s70 = sphi 0, %s70
    %s72 = sphi 0, %s70
    %s73 = sphi 0, %s72
    %s87 = sphi 0, %s73
    %s91 = sphi 0, %s91
    %s93 = sphi 0, %s91
    %s94 = sphi 0, %s93
    %s108 = sphi 0, %s94
    %s112 = sphi 0, %s112
    %s114 = sphi 0, %s112
    %s115 = sphi 0, %s114
    %s129 = sphi 0, %s115
    %s133 = sphi 0, %s133
    %s135 = sphi 0, %s133
    %s136 = sphi 0, %s135
    %s150 = sphi 0, %s136
    %s154 = sphi 0, %s154
    %s156 = sphi 0, %s154
    %s157 = sphi 0, %s156
    %s171 = sphi 0, %s157
    %s175 = sphi 0, %s175
    %s177 = sphi 0, %s175
    %s178 = sphi 0, %s177
    %s192 = sphi 0, %s178
    %s196 = sphi 0, %s196
    %s198 = sphi 0, %s196
    %s199 = sphi 0, %s198
    %s213 = sphi 0, %s199
    %s219 = sphi 0, %s221
    %s222 = sphi 0, %s219
    %s223 = sphi 0, %s222
    %s239 = sphi 0, %s223
  $region4: #{tpu_custom_call.1} parent=0 // loop_header_branch
    %18 = sbr.rel (%p16) target = $region8
  $region5: #{tpu_custom_call.1} parent=0 // loop_body
    %s20 = ssub.s32 %s15, 1
    %s21 = ssub.s32 %s15, 2
    %s22 = sadd.s32 %s15, 1
    %s23 = ssub.s32 %s15, %s22
    %p24 = scmp.eq.s32.totalorder %s23, 0
    %s26 = sadd.s32 %s25, 1
    %s27 = scalar_select %p24, %s25, %s26
    %p30 = pneg %p24
    %p31 = scmp.eq.s32.totalorder %s15, 1
    %p32 = por %p30, %p31
    %p33 = scmp.ne.s32.totalorder %s25, %s28
    %p34 = scmp.eq.s32.totalorder %s15, 0
    %p35 = por %p33, %p34
    %p36 = scmp.ne.s32.totalorder %s25, %s28
    %p37 = scmp.eq.s32.totalorder %s20, 1
    %p38 = por %p36, %p37
    %p39 = scmp.ne.s32.totalorder %s28, %s29
    %p40 = scmp.eq.s32.totalorder %s20, 0
    %p41 = por %p39, %p40
    %p42 = scmp.ne.s32.totalorder %s28, %s29
    %p43 = scmp.eq.s32.totalorder %s21, 1
    %p44 = por %p42, %p43
    %p46 = scmp.ne.s32.totalorder %s29, %s45
    %p47 = scmp.eq.s32.totalorder %s21, 0
    %p48 = por %p46, %p47
    %s50 = sadd.s32 %s49, 1
    %p53 = scmp.eq.s32.totalorder %s15, 1
    %p54 = scmp.ne.s32.totalorder %s49, %s51
    %p55 = scmp.eq.s32.totalorder %s15, 0
    %p56 = por %p54, %p55
    %p57 = scmp.ne.s32.totalorder %s49, %s51
    %p58 = scmp.eq.s32.totalorder %s20, 1
    %p59 = por %p57, %p58
    %p60 = scmp.ne.s32.totalorder %s51, %s52
    %p61 = scmp.eq.s32.totalorder %s20, 0
    %p62 = por %p60, %p61
    %p63 = scmp.ne.s32.totalorder %s51, %s52
    %p64 = scmp.eq.s32.totalorder %s21, 1
    %p65 = por %p63, %p64
    %p67 = scmp.ne.s32.totalorder %s52, %s66
    %p68 = scmp.eq.s32.totalorder %s21, 0
    %p69 = por %p67, %p68
    %s71 = sadd.s32 %s70, 1
    %p74 = scmp.eq.s32.totalorder %s15, 1
    %p75 = scmp.ne.s32.totalorder %s70, %s72
    %p76 = scmp.eq.s32.totalorder %s15, 0
    %p77 = por %p75, %p76
    %p78 = scmp.ne.s32.totalorder %s70, %s72
    %p79 = scmp.eq.s32.totalorder %s20, 1
    %p80 = por %p78, %p79
    %p81 = scmp.ne.s32.totalorder %s72, %s73
    %p82 = scmp.eq.s32.totalorder %s20, 0
    %p83 = por %p81, %p82
    %p84 = scmp.ne.s32.totalorder %s72, %s73
    %p85 = scmp.eq.s32.totalorder %s21, 1
    %p86 = por %p84, %p85
    %p88 = scmp.ne.s32.totalorder %s73, %s87
    %p89 = scmp.eq.s32.totalorder %s21, 0
    %p90 = por %p88, %p89
    %s92 = sadd.s32 %s91, 1
    %p95 = scmp.eq.s32.totalorder %s15, 1
    %p96 = scmp.ne.s32.totalorder %s91, %s93
    %p97 = scmp.eq.s32.totalorder %s15, 0
    %p98 = por %p96, %p97
    %p99 = scmp.ne.s32.totalorder %s91, %s93
    %p100 = scmp.eq.s32.totalorder %s20, 1
    %p101 = por %p99, %p100
    %p102 = scmp.ne.s32.totalorder %s93, %s94
    %p103 = scmp.eq.s32.totalorder %s20, 0
    %p104 = por %p102, %p103
    %p105 = scmp.ne.s32.totalorder %s93, %s94
    %p106 = scmp.eq.s32.totalorder %s21, 1
    %p107 = por %p105, %p106
    %p109 = scmp.ne.s32.totalorder %s94, %s108
    %p110 = scmp.eq.s32.totalorder %s21, 0
    %p111 = por %p109, %p110
    %s113 = sadd.s32 %s112, 1
    %p116 = scmp.eq.s32.totalorder %s15, 1
    %p117 = scmp.ne.s32.totalorder %s112, %s114
    %p118 = scmp.eq.s32.totalorder %s15, 0
    %p119 = por %p117, %p118
    %p120 = scmp.ne.s32.totalorder %s112, %s114
    %p121 = scmp.eq.s32.totalorder %s20, 1
    %p122 = por %p120, %p121
    %p123 = scmp.ne.s32.totalorder %s114, %s115
    %p124 = scmp.eq.s32.totalorder %s20, 0
    %p125 = por %p123, %p124
    %p126 = scmp.ne.s32.totalorder %s114, %s115
    %p127 = scmp.eq.s32.totalorder %s21, 1
    %p128 = por %p126, %p127
    %p130 = scmp.ne.s32.totalorder %s115, %s129
    %p131 = scmp.eq.s32.totalorder %s21, 0
    %p132 = por %p130, %p131
    %s134 = sadd.s32 %s133, 1
    %p137 = scmp.eq.s32.totalorder %s15, 1
    %p138 = scmp.ne.s32.totalorder %s133, %s135
    %p139 = scmp.eq.s32.totalorder %s15, 0
    %p140 = por %p138, %p139
    %p141 = scmp.ne.s32.totalorder %s133, %s135
    %p142 = scmp.eq.s32.totalorder %s20, 1
    %p143 = por %p141, %p142
    %p144 = scmp.ne.s32.totalorder %s135, %s136
    %p145 = scmp.eq.s32.totalorder %s20, 0
    %p146 = por %p144, %p145
    %p147 = scmp.ne.s32.totalorder %s135, %s136
    %p148 = scmp.eq.s32.totalorder %s21, 1
    %p149 = por %p147, %p148
    %p151 = scmp.ne.s32.totalorder %s136, %s150
    %p152 = scmp.eq.s32.totalorder %s21, 0
    %p153 = por %p151, %p152
    %s155 = sadd.s32 %s154, 1
    %p158 = scmp.eq.s32.totalorder %s15, 1
    %p159 = scmp.ne.s32.totalorder %s154, %s156
    %p160 = scmp.eq.s32.totalorder %s15, 0
    %p161 = por %p159, %p160
    %p162 = scmp.ne.s32.totalorder %s154, %s156
    %p163 = scmp.eq.s32.totalorder %s20, 1
    %p164 = por %p162, %p163
    %p165 = scmp.ne.s32.totalorder %s156, %s157
    %p166 = scmp.eq.s32.totalorder %s20, 0
    %p167 = por %p165, %p166
    %p168 = scmp.ne.s32.totalorder %s156, %s157
    %p169 = scmp.eq.s32.totalorder %s21, 1
    %p170 = por %p168, %p169
    %p172 = scmp.ne.s32.totalorder %s157, %s171
    %p173 = scmp.eq.s32.totalorder %s21, 0
    %p174 = por %p172, %p173
    %s176 = sadd.s32 %s175, 1
    %p179 = scmp.eq.s32.totalorder %s15, 1
    %p180 = scmp.ne.s32.totalorder %s175, %s177
    %p181 = scmp.eq.s32.totalorder %s15, 0
    %p182 = por %p180, %p181
    %p183 = scmp.ne.s32.totalorder %s175, %s177
    %p184 = scmp.eq.s32.totalorder %s20, 1
    %p185 = por %p183, %p184
    %p186 = scmp.ne.s32.totalorder %s177, %s178
    %p187 = scmp.eq.s32.totalorder %s20, 0
    %p188 = por %p186, %p187
    %p189 = scmp.ne.s32.totalorder %s177, %s178
    %p190 = scmp.eq.s32.totalorder %s21, 1
    %p191 = por %p189, %p190
    %p193 = scmp.ne.s32.totalorder %s178, %s192
    %p194 = scmp.eq.s32.totalorder %s21, 0
    %p195 = por %p193, %p194
    %s197 = sadd.s32 %s196, 1
    %p200 = scmp.eq.s32.totalorder %s15, 1
    %p201 = scmp.ne.s32.totalorder %s196, %s198
    %p202 = scmp.eq.s32.totalorder %s15, 0
    %p203 = por %p201, %p202
    %p204 = scmp.ne.s32.totalorder %s196, %s198
    %p205 = scmp.eq.s32.totalorder %s20, 1
    %p206 = por %p204, %p205
    %p207 = scmp.ne.s32.totalorder %s198, %s199
    %p208 = scmp.eq.s32.totalorder %s20, 0
    %p209 = por %p207, %p208
    %p210 = scmp.ne.s32.totalorder %s198, %s199
    %p211 = scmp.eq.s32.totalorder %s21, 1
    %p212 = por %p210, %p211
    %p214 = scmp.ne.s32.totalorder %s199, %s213
    %p215 = scmp.eq.s32.totalorder %s21, 0
    %p216 = por %p214, %p215
    %s217 = ssub.s32 %s15, %s22
    %p218 = scmp.eq.s32.totalorder %s217, 0
    %s220 = sadd.s32 %s219, 1
    %s221 = scalar_select %p218, %s219, %s220
    %p224 = pneg %p218
    %p225 = scmp.eq.s32.totalorder %s15, 1
    %p226 = por %p224, %p225
    %p227 = scmp.ne.s32.totalorder %s219, %s222
    %p228 = scmp.eq.s32.totalorder %s15, 0
    %p229 = por %p227, %p228
    %p230 = scmp.ne.s32.totalorder %s219, %s222
    %p231 = scmp.eq.s32.totalorder %s20, 1
    %p232 = por %p230, %p231
    %p233 = scmp.ne.s32.totalorder %s222, %s223
    %p234 = scmp.eq.s32.totalorder %s20, 0
    %p235 = por %p233, %p234
    %p236 = scmp.ne.s32.totalorder %s222, %s223
    %p237 = scmp.eq.s32.totalorder %s21, 1
    %p238 = por %p236, %p237
    %p240 = scmp.ne.s32.totalorder %s223, %s239
    %p241 = scmp.eq.s32.totalorder %s21, 0
    %p242 = por %p240, %p241
    %p243 = scmp.le.s32.totalorder 1, %s15
    %p244 = scmp.lt.s32.totalorder %s15, 3
    %p245 = pnand %p243, %p244
    %p246 = pneg %p245
    // Predicated region
    $region9: #{tpu_custom_call.1} parent=5 // pred_check
      _
    $region10: #{tpu_custom_call.1} parent=5 // pred_check_branch
      %248 = sbr.rel (%p245) target = $region12
    $region11: #{tpu_custom_call.1} parent=5 // pred_region
      %s249 = ssub.s32 %s15, 1
      // Predicated region
      $region13: #{tpu_custom_call.1} parent=11 // pred_check
        %p250 = pneg %p62
      $region14: #{tpu_custom_call.1} parent=11 // pred_check_branch
        %252 = sbr.rel (%p250) target = $region16
      $region15: #{tpu_custom_call.1} parent=11 // pred_region
        _
      $region16: #{tpu_custom_call.1} parent=11 // pred_fallthru
        _
      // Predicated region
      $region17: #{tpu_custom_call.1} parent=11 // pred_check
        %p253 = pneg %p83
      $region18: #{tpu_custom_call.1} parent=11 // pred_check_branch
        %255 = sbr.rel (%p253) target = $region20
      $region19: #{tpu_custom_call.1} parent=11 // pred_region
        _
      $region20: #{tpu_custom_call.1} parent=11 // pred_fallthru
        _
      // Predicated region
      $region21: #{tpu_custom_call.1} parent=11 // pred_check
        %p256 = pneg %p104
      $region22: #{tpu_custom_call.1} parent=11 // pred_check_branch
        %258 = sbr.rel (%p256) target = $region24
      $region23: #{tpu_custom_call.1} parent=11 // pred_region
        _
      $region24: #{tpu_custom_call.1} parent=11 // pred_fallthru
        _
      // Predicated region
      $region25: #{tpu_custom_call.1} parent=11 // pred_check
        %p259 = pneg %p125
      $region26: #{tpu_custom_call.1} parent=11 // pred_check_branch
        %261 = sbr.rel (%p259) target = $region28
      $region27: #{tpu_custom_call.1} parent=11 // pred_region
        _
      $region28: #{tpu_custom_call.1} parent=11 // pred_fallthru
        _
      // Predicated region
      $region29: #{tpu_custom_call.1} parent=11 // pred_check
        %p262 = pneg %p146
      $region30: #{tpu_custom_call.1} parent=11 // pred_check_branch
        %264 = sbr.rel (%p262) target = $region32
      $region31: #{tpu_custom_call.1} parent=11 // pred_region
        _
      $region32: #{tpu_custom_call.1} parent=11 // pred_fallthru
        _
      // Predicated region
      $region33: #{tpu_custom_call.1} parent=11 // pred_check
        %p265 = pneg %p167
      $region34: #{tpu_custom_call.1} parent=11 // pred_check_branch
        %267 = sbr.rel (%p265) target = $region36
      $region35: #{tpu_custom_call.1} parent=11 // pred_region
        _
      $region36: #{tpu_custom_call.1} parent=11 // pred_fallthru
        _
      // Predicated region
      $region37: #{tpu_custom_call.1} parent=11 // pred_check
        %p268 = pneg %p188
      $region38: #{tpu_custom_call.1} parent=11 // pred_check_branch
        %270 = sbr.rel (%p268) target = $region40
      $region39: #{tpu_custom_call.1} parent=11 // pred_region
        _
      $region40: #{tpu_custom_call.1} parent=11 // pred_fallthru
        _
      // Predicated region
      $region41: #{tpu_custom_call.1} parent=11 // pred_check
        %p271 = pneg %p209
      $region42: #{tpu_custom_call.1} parent=11 // pred_check_branch
        %273 = sbr.rel (%p271) target = $region44
      $region43: #{tpu_custom_call.1} parent=11 // pred_region
        _
      $region44: #{tpu_custom_call.1} parent=11 // pred_fallthru
        _
    $region12: #{tpu_custom_call.1} parent=5 // pred_fallthru
      _
    %p274 = scmp.lt.s32.totalorder %s15, 2
    // Predicated region
    $region45: #{tpu_custom_call.1} parent=5 // pred_check
      %p275 = pneg %p274
    $region46: #{tpu_custom_call.1} parent=5 // pred_check_branch
      %277 = sbr.rel (%p275) target = $region48
    $region47: #{tpu_custom_call.1} parent=5 // pred_region
      // Predicated region
      $region49: #{tpu_custom_call.1} parent=47 // pred_check
        %p278 = pneg %p35
      $region50: #{tpu_custom_call.1} parent=47 // pred_check_branch
        %280 = sbr.rel (%p278) target = $region52
      $region51: #{tpu_custom_call.1} parent=47 // pred_region
        %s281 = smul.u32 18, %s15
        %p282 = scmp.lt.s32.totalorder %s281, 35
        %s283 = scalar_select %p282, %s281, 35
        %s284 = smul.addr %s283, 4
        %s285 = scalar_lea.vmem %s0, %s284
        %s286 = smul.u32 18, %s15
      $region52: #{tpu_custom_call.1} parent=47 // pred_fallthru
        _
    $region48: #{tpu_custom_call.1} parent=5 // pred_fallthru
      _
    %p287 = scmp.le.s32.totalorder 1, %s15
    %p288 = scmp.lt.s32.totalorder %s15, 3
    %p289 = pnand %p287, %p288
    %p290 = pneg %p289
    // Predicated region
    $region53: #{tpu_custom_call.1} parent=5 // pred_check
      _
    $region54: #{tpu_custom_call.1} parent=5 // pred_check_branch
      %292 = sbr.rel (%p289) target = $region56
    $region55: #{tpu_custom_call.1} parent=5 // pred_region
      %s293 = ssub.s32 %s15, 1
      %s294 = smul.u32 18, %s20
      %p295 = scmp.lt.s32.totalorder %s294, 35
      %s296 = scalar_select %p295, %s294, 35
      %s297 = smul.addr %s296, 4
      %s298 = scalar_lea.vmem %s0, %s297
      %p299 = pneg %p41
      %p300 = pneg %p38
      %p301 = pneg %p62
      %p302 = pneg %p59
      %p303 = pneg %p83
      %p304 = pneg %p80
      %p305 = pneg %p104
      %p306 = pneg %p101
      %p307 = pneg %p125
      %p308 = pneg %p122
      %p309 = pneg %p146
      %p310 = pneg %p143
      %p311 = pneg %p167
      %p312 = pneg %p164
      %p313 = pneg %p188
      %p314 = pneg %p185
      %p315 = pneg %p209
      %p316 = pneg %p206
      %p317 = pneg %p235
      %p318 = pneg %p232
      %s319 = smul.u32 18, %s20
      %p320 = scmp.lt.s32.totalorder %s319, 35
      %s321 = scalar_select %p320, %s319, 35
      %s322 = smul.addr %s321, 4
      %s323 = scalar_lea.vmem %s9, %s322
      %s324 = smul.u32 18, %s20
      %p325 = scmp.lt.s32.totalorder %s324, 35
      %s326 = scalar_select %p325, %s324, 35
      %s327 = smul.addr %s326, 4
      %s328 = scalar_lea.vmem %s0, %s327
      %s329 = smul.u32 18, %s20
      %s330 = smul.u32 18, %s20
      %p331 = scmp.lt.s32.totalorder %s330, 35
      %s332 = scalar_select %p331, %s330, 35
      %s333 = smul.addr %s332, 4
      %s334 = scalar_lea.vmem %s9, %s333
      %s335 = smul.u32 18, %s20
      %v337 = vld [vmem:[%s328] sm:$0xf]
      %v338 = vld [vmem:[%s328 + $0x4] sm:$0xf]
      %v339 = vld [vmem:[%s328 + $0x8] sm:$0xf]
      %v340 = vld [vmem:[%s328 + $0xc] sm:$0xf]
      %v341 = vld [vmem:[%s328 + $0x10] sm:$0xf]
      %v342 = vld [vmem:[%s328 + $0x14] sm:$0xf]
      %v343 = vld [vmem:[%s328 + $0x18] sm:$0xf]
      %v344 = vld [vmem:[%s328 + $0x1c] sm:$0xf]
      %v345 = vld [vmem:[%s328 + $0x20] sm:$0xf]
      %v346 = vld [vmem:[%s328 + $0x24] sm:$0xf]
      %v347 = vld [vmem:[%s328 + $0x28] sm:$0xf]
      %v348 = vld [vmem:[%s328 + $0x2c] sm:$0xf]
      %v349 = vld [vmem:[%s328 + $0x30] sm:$0xf]
      %v350 = vld [vmem:[%s328 + $0x34] sm:$0xf]
      %v351 = vld [vmem:[%s328 + $0x38] sm:$0xf]
      %v352 = vld [vmem:[%s328 + $0x3c] sm:$0xf]
      %v353 = vld [vmem:[%s328 + $0x40] sm:$0xf]
      %v354 = vld [vmem:[%s328 + $0x44] sm:$0xf]
      %v355 = vld [vmem:[%s1] sm:$0xf]
      %v356 = vld [vmem:[%s1 + $0x4] sm:$0xf]
      %v357 = vld [vmem:[%s1 + $0x8] sm:$0xf]
      %v358 = vld [vmem:[%s1 + $0xc] sm:$0xf]
      %v359 = vld [vmem:[%s1 + $0x10] sm:$0xf]
      %v360 = vld [vmem:[%s1 + $0x14] sm:$0xf]
      %v361 = vld [vmem:[%s1 + $0x18] sm:$0xf]
      %v362 = vld [vmem:[%s1 + $0x1c] sm:$0xf]
      %v363 = vld [vmem:[%s2] sm:$0x1]
      %v365 = vlaneseq
      %v366 = vshrl.u32 %v365, 7
      %v367 = vsub.s32 0, %v366
      %v368 = vrot.slane %v363, %v367
      %v388 = vunpack.c.l.b16 %v337
      %v389 = vunpack.c.l.b16 %v338
      %v390 = vunpack.c.l.b16 %v339
      %v391 = vunpack.c.l.b16 %v340
      %v392 = vunpack.c.l.b16 %v341
      %v393 = vunpack.c.l.b16 %v342
      %v394 = vunpack.c.l.b16 %v343
      %v395 = vunpack.c.l.b16 %v344
      %v396 = vunpack.c.l.b16 %v345
      %v397 = vunpack.c.l.b16 %v346
      %v398 = vunpack.c.l.b16 %v347
      %v399 = vunpack.c.l.b16 %v348
      %v400 = vunpack.c.l.b16 %v349
      %v401 = vunpack.c.l.b16 %v350
      %v402 = vunpack.c.l.b16 %v351
      %v403 = vunpack.c.l.b16 %v352
      %v404 = vunpack.c.l.b16 %v353
      %v405 = vunpack.c.l.b16 %v354
      %v406 = vpack.c.b16 %v389, %v388
      %v407 = vpack.c.b16 %v391, %v390
      %v408 = vpack.c.b16 %v393, %v392
      %v409 = vpack.c.b16 %v395, %v394
      %v410 = vpack.c.b16 %v397, %v396
      %v411 = vpack.c.b16 %v399, %v398
      %v412 = vpack.c.b16 %v401, %v400
      %v413 = vpack.c.b16 %v403, %v402
      %v414 = vpack.c.b16 %v405, %v404
      %v423 = vunpack.c.l.b16 %v355
      %v424 = vunpack.c.l.b16 %v356
      %v425 = vunpack.c.l.b16 %v357
      %v426 = vunpack.c.l.b16 %v358
      %v427 = vunpack.c.l.b16 %v359
      %v428 = vunpack.c.l.b16 %v360
      %v429 = vunpack.c.l.b16 %v361
      %v430 = vunpack.c.l.b16 %v362
      %v431 = vpack.c.b16 %v424, %v423
      %v432 = vpack.c.b16 %v426, %v425
      %v433 = vpack.c.b16 %v428, %v427
      %v434 = vpack.c.b16 %v430, %v429
      %vm439 = vcmask 523264
      %v441 = vsel %vm439, %v406, 0
      %v444 = vsel %vm439, %v407, 0
      %v447 = vsel %vm439, %v408, 0
      %v450 = vsel %vm439, %v409, 0
      %v453 = vsel %vm439, %v410, 0
      %v456 = vsel %vm439, %v411, 0
      %v459 = vsel %vm439, %v412, 0
      %v462 = vsel %vm439, %v413, 0
      %v465 = vsel %vm439, %v414, 0
      %467 = vmatprep.subr.bf16.mxu0 0
      %468 = vmatpush1.bf16.msra.mxu0 %v431
      %469 = vmatprep.subr.bf16.mxu0 0
      %470 = vmatpush1.bf16.msra.mxu0 %v432
      %471 = vmatprep.subr.bf16.mxu0 0
      %472 = vmatpush1.bf16.msra.mxu0 %v433
      %473 = vmatprep.subr.bf16.mxu0 0
      %474 = vmatpush1.bf16.msra.mxu0 %v434
      %475 = vmatprep.subr.bf16.mxu0 0
      %476 = vmatpush1.bf16.msra.mxu0 0
      %477 = vmatprep.subr.bf16.mxu0 0
      %478 = vmatpush1.bf16.msra.mxu0 0
      %479 = vmatprep.subr.bf16.mxu0 0
      %480 = vmatpush1.bf16.msra.mxu0 0
      %481 = vmatprep.subr.bf16.mxu0 0
      %482 = vmatpush1.bf16.msra.mxu0 0
      %483 = vmatprep.subr.bf16.mxu0 0
      %484 = vmatpush1.bf16.msra.mxu0 0
      %485 = vmatprep.subr.bf16.mxu0 0
      %486 = vmatpush1.bf16.msra.mxu0 0
      %487 = vmatprep.subr.bf16.mxu0 0
      %488 = vmatpush1.bf16.msra.mxu0 0
      %489 = vmatprep.subr.bf16.mxu0 0
      %490 = vmatpush1.bf16.msra.mxu0 0
      %491 = vmatprep.subr.bf16.mxu0 0
      %492 = vmatpush1.bf16.msra.mxu0 0
      %493 = vmatprep.subr.bf16.mxu0 0
      %494 = vmatpush1.bf16.msra.mxu0 0
      %495 = vmatprep.subr.bf16.mxu0 0
      %496 = vmatpush1.bf16.msra.mxu0 0
      %497 = vmatprep.subr.bf16.mxu0 0
      %498 = vmatpush1.bf16.msra.mxu0 0
      %499 = vmatprep.mubr.bf16.mxu0 0
      %500 = vmatmul.mubr.bf16.gmra.mrb[0].mxu0 %v441
      %v501 = vpop.f32.mrb[0].mxu0
      %v502 = vadd.f32 %v368, %v501
      %v503 = vpop.f32.mrb[0].mxu0
      %v504 = vpop.f32.mrb[0].mxu0
      %v505 = vadd.f32 %v368, %v504
      %v506 = vpop.f32.mrb[0].mxu0
      %507 = vmatprep.mubr.bf16.mxu0 0
      %508 = vmatmul.mubr.bf16.gmra.mrb[0].mxu0 %v444
      %v509 = vpop.f32.mrb[0].mxu0
      %v510 = vadd.f32 %v368, %v509
      %v511 = vpop.f32.mrb[0].mxu0
      %v512 = vpop.f32.mrb[0].mxu0
      %v513 = vadd.f32 %v368, %v512
      %v514 = vpop.f32.mrb[0].mxu0
      %515 = vmatprep.mubr.bf16.mxu0 0
      %516 = vmatmul.mubr.bf16.gmra.mrb[0].mxu0 %v447
      %v517 = vpop.f32.mrb[0].mxu0
      %v518 = vadd.f32 %v368, %v517
      %v519 = vpop.f32.mrb[0].mxu0
      %v520 = vpop.f32.mrb[0].mxu0
      %v521 = vadd.f32 %v368, %v520
      %v522 = vpop.f32.mrb[0].mxu0
      %523 = vmatprep.mubr.bf16.mxu0 0
      %524 = vmatmul.mubr.bf16.gmra.mrb[0].mxu0 %v450
      %v525 = vpop.f32.mrb[0].mxu0
      %v526 = vadd.f32 %v368, %v525
      %v527 = vpop.f32.mrb[0].mxu0
      %v528 = vpop.f32.mrb[0].mxu0
      %v529 = vadd.f32 %v368, %v528
      %v530 = vpop.f32.mrb[0].mxu0
      %531 = vmatprep.mubr.bf16.mxu0 0
      %532 = vmatmul.mubr.bf16.gmra.mrb[0].mxu0 %v453
      %v533 = vpop.f32.mrb[0].mxu0
      %v534 = vadd.f32 %v368, %v533
      %v535 = vpop.f32.mrb[0].mxu0
      %v536 = vpop.f32.mrb[0].mxu0
      %v537 = vadd.f32 %v368, %v536
      %v538 = vpop.f32.mrb[0].mxu0
      %539 = vmatprep.mubr.bf16.mxu0 0
      %540 = vmatmul.mubr.bf16.gmra.mrb[0].mxu0 %v456
      %v541 = vpop.f32.mrb[0].mxu0
      %v542 = vadd.f32 %v368, %v541
      %v543 = vpop.f32.mrb[0].mxu0
      %v544 = vpop.f32.mrb[0].mxu0
      %v545 = vadd.f32 %v368, %v544
      %v546 = vpop.f32.mrb[0].mxu0
      %547 = vmatprep.mubr.bf16.mxu0 0
      %548 = vmatmul.mubr.bf16.gmra.mrb[0].mxu0 %v459
      %v549 = vpop.f32.mrb[0].mxu0
      %v550 = vadd.f32 %v368, %v549
      %v551 = vpop.f32.mrb[0].mxu0
      %v552 = vpop.f32.mrb[0].mxu0
      %v553 = vadd.f32 %v368, %v552
      %v554 = vpop.f32.mrb[0].mxu0
      %555 = vmatprep.mubr.bf16.mxu0 0
      %556 = vmatmul.mubr.bf16.gmra.mrb[0].mxu0 %v462
      %v557 = vpop.f32.mrb[0].mxu0
      %v558 = vadd.f32 %v368, %v557
      %v559 = vpop.f32.mrb[0].mxu0
      %v560 = vpop.f32.mrb[0].mxu0
      %v561 = vadd.f32 %v368, %v560
      %v562 = vpop.f32.mrb[0].mxu0
      %563 = vmatprep.mubr.bf16.mxu0 0
      %564 = vmatmul.mubr.bf16.gmra.mrb[0].mxu0 %v465
      %v565 = vpop.f32.mrb[0].mxu0
      %v566 = vadd.f32 %v368, %v565
      %v567 = vpop.f32.mrb[0].mxu0
      %v568 = vpop.f32.mrb[0].mxu0
      %v569 = vadd.f32 %v368, %v568
      %v570 = vpop.f32.mrb[0].mxu0
      %571 = vdwg.mxu0
      %v572 = vmax.f32 %v502, 0.0
      %v573 = vmax.f32 %v505, 0.0
      %v574 = vmax.f32 %v510, 0.0
      %v575 = vmax.f32 %v513, 0.0
      %v576 = vmax.f32 %v518, 0.0
      %v577 = vmax.f32 %v521, 0.0
      %v578 = vmax.f32 %v526, 0.0
      %v579 = vmax.f32 %v529, 0.0
      %v580 = vmax.f32 %v534, 0.0
      %v581 = vmax.f32 %v537, 0.0
      %v582 = vmax.f32 %v542, 0.0
      %v583 = vmax.f32 %v545, 0.0
      %v584 = vmax.f32 %v550, 0.0
      %v585 = vmax.f32 %v553, 0.0
      %v586 = vmax.f32 %v558, 0.0
      %v587 = vmax.f32 %v561, 0.0
      %v588 = vmax.f32 %v566, 0.0
      %v589 = vmax.f32 %v569, 0.0
      %v590 = vpack.c.bf16 %v573, %v572
      %v591 = vpack.c.bf16 %v575, %v574
      %v592 = vpack.c.bf16 %v577, %v576
      %v593 = vpack.c.bf16 %v579, %v578
      %v594 = vpack.c.bf16 %v581, %v580
      %v595 = vpack.c.bf16 %v583, %v582
      %v596 = vpack.c.bf16 %v585, %v584
      %v597 = vpack.c.bf16 %v587, %v586
      %v598 = vpack.c.bf16 %v589, %v588
      %v599 = vld [vmem:[%s3] sm:$0xf]
      %v600 = vld [vmem:[%s3 + $0x4] sm:$0xf]
      %v601 = vld [vmem:[%s3 + $0x8] sm:$0xf]
      %v602 = vld [vmem:[%s3 + $0xc] sm:$0xf]
      %v603 = vld [vmem:[%s4] sm:$0x1]
      %v605 = vlaneseq
      %v606 = vshrl.u32 %v605, 7
      %v607 = vsub.s32 0, %v606
      %v608 = vrot.slane %v603, %v607
      %v614 = vunpack.c.l.b16 %v599
      %v615 = vunpack.c.l.b16 %v600
      %v616 = vunpack.c.l.b16 %v601
      %v617 = vunpack.c.l.b16 %v602
      %v618 = vpack.c.b16 %v615, %v614
      %v619 = vpack.c.b16 %v617, %v616
      %vm622 = vcmask 261120
      %v624 = vsel %vm622, %v590, 0
      %v627 = vsel %vm622, %v591, 0
      %v630 = vsel %vm622, %v592, 0
      %v633 = vsel %vm622, %v593, 0
      %v636 = vsel %vm622, %v594, 0
      %v639 = vsel %vm622, %v595, 0
      %v642 = vsel %vm622, %v596, 0
      %v645 = vsel %vm622, %v597, 0
      %v648 = vsel %vm622, %v598, 0
      %650 = vmatprep.subr.bf16.mxu0 0
      %651 = vmatpush1.bf16.msra.mxu0 %v618
      %652 = vmatprep.subr.bf16.mxu0 0
      %653 = vmatpush1.bf16.msra.mxu0 %v619
      %654 = vmatprep.subr.bf16.mxu0 0
      %655 = vmatpush1.bf16.msra.mxu0 0
      %656 = vmatprep.subr.bf16.mxu0 0
      %657 = vmatpush1.bf16.msra.mxu0 0
      %658 = vmatprep.subr.bf16.mxu0 0
      %659 = vmatpush1.bf16.msra.mxu0 0
      %660 = vmatprep.subr.bf16.mxu0 0
      %661 = vmatpush1.bf16.msra.mxu0 0
      %662 = vmatprep.subr.bf16.mxu0 0
      %663 = vmatpush1.bf16.msra.mxu0 0
      %664 = vmatprep.subr.bf16.mxu0 0
      %665 = vmatpush1.bf16.msra.mxu0 0
      %666 = vmatprep.subr.bf16.mxu0 0
      %667 = vmatpush1.bf16.msra.mxu0 0
      %668 = vmatprep.subr.bf16.mxu0 0
      %669 = vmatpush1.bf16.msra.mxu0 0
      %670 = vmatprep.subr.bf16.mxu0 0
      %671 = vmatpush1.bf16.msra.mxu0 0
      %672 = vmatprep.subr.bf16.mxu0 0
      %673 = vmatpush1.bf16.msra.mxu0 0
      %674 = vmatprep.subr.bf16.mxu0 0
      %675 = vmatpush1.bf16.msra.mxu0 0
      %676 = vmatprep.subr.bf16.mxu0 0
      %677 = vmatpush1.bf16.msra.mxu0 0
      %678 = vmatprep.subr.bf16.mxu0 0
      %679 = vmatpush1.bf16.msra.mxu0 0
      %680 = vmatprep.subr.bf16.mxu0 0
      %681 = vmatpush1.bf16.msra.mxu0 0
      %682 = vmatprep.mubr.bf16.mxu0 0
      %683 = vmatmul.mubr.bf16.gmra.mrb[0].mxu0 %v624
      %v684 = vpop.f32.mrb[0].mxu0
      %v685 = vadd.f32 %v608, %v684
      %v686 = vpop.f32.mrb[0].mxu0
      %v687 = vpop.f32.mrb[0].mxu0
      %v688 = vadd.f32 %v608, %v687
      %v689 = vpop.f32.mrb[0].mxu0
      %690 = vmatprep.mubr.bf16.mxu0 0
      %691 = vmatmul.mubr.bf16.gmra.mrb[0].mxu0 %v627
      %v692 = vpop.f32.mrb[0].mxu0
      %v693 = vadd.f32 %v608, %v692
      %v694 = vpop.f32.mrb[0].mxu0
      %v695 = vpop.f32.mrb[0].mxu0
      %v696 = vadd.f32 %v608, %v695
      %v697 = vpop.f32.mrb[0].mxu0
      %698 = vmatprep.mubr.bf16.mxu0 0
      %699 = vmatmul.mubr.bf16.gmra.mrb[0].mxu0 %v630
      %v700 = vpop.f32.mrb[0].mxu0
      %v701 = vadd.f32 %v608, %v700
      %v702 = vpop.f32.mrb[0].mxu0
      %v703 = vpop.f32.mrb[0].mxu0
      %v704 = vadd.f32 %v608, %v703
      %v705 = vpop.f32.mrb[0].mxu0
      %706 = vmatprep.mubr.bf16.mxu0 0
      %707 = vmatmul.mubr.bf16.gmra.mrb[0].mxu0 %v633
      %v708 = vpop.f32.mrb[0].mxu0
      %v709 = vadd.f32 %v608, %v708
      %v710 = vpop.f32.mrb[0].mxu0
      %v711 = vpop.f32.mrb[0].mxu0
      %v712 = vadd.f32 %v608, %v711
      %v713 = vpop.f32.mrb[0].mxu0
      %714 = vmatprep.mubr.bf16.mxu0 0
      %715 = vmatmul.mubr.bf16.gmra.mrb[0].mxu0 %v636
      %v716 = vpop.f32.mrb[0].mxu0
      %v717 = vadd.f32 %v608, %v716
      %v718 = vpop.f32.mrb[0].mxu0
      %v719 = vpop.f32.mrb[0].mxu0
      %v720 = vadd.f32 %v608, %v719
      %v721 = vpop.f32.mrb[0].mxu0
      %722 = vmatprep.mubr.bf16.mxu0 0
      %723 = vmatmul.mubr.bf16.gmra.mrb[0].mxu0 %v639
      %v724 = vpop.f32.mrb[0].mxu0
      %v725 = vadd.f32 %v608, %v724
      %v726 = vpop.f32.mrb[0].mxu0
      %v727 = vpop.f32.mrb[0].mxu0
      %v728 = vadd.f32 %v608, %v727
      %v729 = vpop.f32.mrb[0].mxu0
      %730 = vmatprep.mubr.bf16.mxu0 0
      %731 = vmatmul.mubr.bf16.gmra.mrb[0].mxu0 %v642
      %v732 = vpop.f32.mrb[0].mxu0
      %v733 = vadd.f32 %v608, %v732
      %v734 = vpop.f32.mrb[0].mxu0
      %v735 = vpop.f32.mrb[0].mxu0
      %v736 = vadd.f32 %v608, %v735
      %v737 = vpop.f32.mrb[0].mxu0
      %738 = vmatprep.mubr.bf16.mxu0 0
      %739 = vmatmul.mubr.bf16.gmra.mrb[0].mxu0 %v645
      %v740 = vpop.f32.mrb[0].mxu0
      %v741 = vadd.f32 %v608, %v740
      %v742 = vpop.f32.mrb[0].mxu0
      %v743 = vpop.f32.mrb[0].mxu0
      %v744 = vadd.f32 %v608, %v743
      %v745 = vpop.f32.mrb[0].mxu0
      %746 = vmatprep.mubr.bf16.mxu0 0
      %747 = vmatmul.mubr.bf16.gmra.mrb[0].mxu0 %v648
      %v748 = vpop.f32.mrb[0].mxu0
      %v749 = vadd.f32 %v608, %v748
      %v750 = vpop.f32.mrb[0].mxu0
      %v751 = vpop.f32.mrb[0].mxu0
      %v752 = vadd.f32 %v608, %v751
      %v753 = vpop.f32.mrb[0].mxu0
      %754 = vdwg.mxu0
      %v755 = vmax.f32 %v685, 0.0
      %v756 = vmax.f32 %v688, 0.0
      %v757 = vmax.f32 %v693, 0.0
      %v758 = vmax.f32 %v696, 0.0
      %v759 = vmax.f32 %v701, 0.0
      %v760 = vmax.f32 %v704, 0.0
      %v761 = vmax.f32 %v709, 0.0
      %v762 = vmax.f32 %v712, 0.0
      %v763 = vmax.f32 %v717, 0.0
      %v764 = vmax.f32 %v720, 0.0
      %v765 = vmax.f32 %v725, 0.0
      %v766 = vmax.f32 %v728, 0.0
      %v767 = vmax.f32 %v733, 0.0
      %v768 = vmax.f32 %v736, 0.0
      %v769 = vmax.f32 %v741, 0.0
      %v770 = vmax.f32 %v744, 0.0
      %v771 = vmax.f32 %v749, 0.0
      %v772 = vmax.f32 %v752, 0.0
      %v773 = vpack.c.bf16 %v756, %v755
      %v774 = vpack.c.bf16 %v758, %v757
      %v775 = vpack.c.bf16 %v760, %v759
      %v776 = vpack.c.bf16 %v762, %v761
      %v777 = vpack.c.bf16 %v764, %v763
      %v778 = vpack.c.bf16 %v766, %v765
      %v779 = vpack.c.bf16 %v768, %v767
      %v780 = vpack.c.bf16 %v770, %v769
      %v781 = vpack.c.bf16 %v772, %v771
      %v782 = vld [vmem:[%s5] sm:$0xf]
      %v783 = vld [vmem:[%s5 + $0x4] sm:$0xf]
      %v784 = vld [vmem:[%s5 + $0x8] sm:$0xf]
      %v785 = vld [vmem:[%s5 + $0xc] sm:$0xf]
      %v786 = vld [vmem:[%s6] sm:$0x1]
      %v788 = vlaneseq
      %v789 = vshrl.u32 %v788, 7
      %v790 = vsub.s32 0, %v789
      %v791 = vrot.slane %v786, %v790
      %v797 = vunpack.c.l.b16 %v782
      %v798 = vunpack.c.l.b16 %v783
      %v799 = vunpack.c.l.b16 %v784
      %v800 = vunpack.c.l.b16 %v785
      %v801 = vpack.c.b16 %v798, %v797
      %v802 = vpack.c.b16 %v800, %v799
      %v806 = vsel %vm622, %v773, 0
      %v809 = vsel %vm622, %v774, 0
      %v812 = vsel %vm622, %v775, 0
      %v815 = vsel %vm622, %v776, 0
      %v818 = vsel %vm622, %v777, 0
      %v821 = vsel %vm622, %v778, 0
      %v824 = vsel %vm622, %v779, 0
      %v827 = vsel %vm622, %v780, 0
      %v830 = vsel %vm622, %v781, 0
      %832 = vmatprep.subr.bf16.mxu0 0
      %833 = vmatpush1.bf16.msra.mxu0 %v801
      %834 = vmatprep.subr.bf16.mxu0 0
      %835 = vmatpush1.bf16.msra.mxu0 %v802
      %836 = vmatprep.subr.bf16.mxu0 0
      %837 = vmatpush1.bf16.msra.mxu0 0
      %838 = vmatprep.subr.bf16.mxu0 0
      %839 = vmatpush1.bf16.msra.mxu0 0
      %840 = vmatprep.subr.bf16.mxu0 0
      %841 = vmatpush1.bf16.msra.mxu0 0
      %842 = vmatprep.subr.bf16.mxu0 0
      %843 = vmatpush1.bf16.msra.mxu0 0
      %844 = vmatprep.subr.bf16.mxu0 0
      %845 = vmatpush1.bf16.msra.mxu0 0
      %846 = vmatprep.subr.bf16.mxu0 0
      %847 = vmatpush1.bf16.msra.mxu0 0
      %848 = vmatprep.subr.bf16.mxu0 0
      %849 = vmatpush1.bf16.msra.mxu0 0
      %850 = vmatprep.subr.bf16.mxu0 0
      %851 = vmatpush1.bf16.msra.mxu0 0
      %852 = vmatprep.subr.bf16.mxu0 0
      %853 = vmatpush1.bf16.msra.mxu0 0
      %854 = vmatprep.subr.bf16.mxu0 0
      %855 = vmatpush1.bf16.msra.mxu0 0
      %856 = vmatprep.subr.bf16.mxu0 0
      %857 = vmatpush1.bf16.msra.mxu0 0
      %858 = vmatprep.subr.bf16.mxu0 0
      %859 = vmatpush1.bf16.msra.mxu0 0
      %860 = vmatprep.subr.bf16.mxu0 0
      %861 = vmatpush1.bf16.msra.mxu0 0
      %862 = vmatprep.subr.bf16.mxu0 0
      %863 = vmatpush1.bf16.msra.mxu0 0
      %864 = vmatprep.mubr.bf16.mxu0 0
      %865 = vmatmul.mubr.bf16.gmra.mrb[0].mxu0 %v806
      %v866 = vpop.f32.mrb[0].mxu0
      %v867 = vadd.f32 %v791, %v866
      %v868 = vpop.f32.mrb[0].mxu0
      %v869 = vpop.f32.mrb[0].mxu0
      %v870 = vadd.f32 %v791, %v869
      %v871 = vpop.f32.mrb[0].mxu0
      %872 = vmatprep.mubr.bf16.mxu0 0
      %873 = vmatmul.mubr.bf16.gmra.mrb[0].mxu0 %v809
      %v874 = vpop.f32.mrb[0].mxu0
      %v875 = vadd.f32 %v791, %v874
      %v876 = vpop.f32.mrb[0].mxu0
      %v877 = vpop.f32.mrb[0].mxu0
      %v878 = vadd.f32 %v791, %v877
      %v879 = vpop.f32.mrb[0].mxu0
      %880 = vmatprep.mubr.bf16.mxu0 0
      %881 = vmatmul.mubr.bf16.gmra.mrb[0].mxu0 %v812
      %v882 = vpop.f32.mrb[0].mxu0
      %v883 = vadd.f32 %v791, %v882
      %v884 = vpop.f32.mrb[0].mxu0
      %v885 = vpop.f32.mrb[0].mxu0
      %v886 = vadd.f32 %v791, %v885
      %v887 = vpop.f32.mrb[0].mxu0
      %888 = vmatprep.mubr.bf16.mxu0 0
      %889 = vmatmul.mubr.bf16.gmra.mrb[0].mxu0 %v815
      %v890 = vpop.f32.mrb[0].mxu0
      %v891 = vadd.f32 %v791, %v890
      %v892 = vpop.f32.mrb[0].mxu0
      %v893 = vpop.f32.mrb[0].mxu0
      %v894 = vadd.f32 %v791, %v893
      %v895 = vpop.f32.mrb[0].mxu0
      %896 = vmatprep.mubr.bf16.mxu0 0
      %897 = vmatmul.mubr.bf16.gmra.mrb[0].mxu0 %v818
      %v898 = vpop.f32.mrb[0].mxu0
      %v899 = vadd.f32 %v791, %v898
      %v900 = vpop.f32.mrb[0].mxu0
      %v901 = vpop.f32.mrb[0].mxu0
      %v902 = vadd.f32 %v791, %v901
      %v903 = vpop.f32.mrb[0].mxu0
      %904 = vmatprep.mubr.bf16.mxu0 0
      %905 = vmatmul.mubr.bf16.gmra.mrb[0].mxu0 %v821
      %v906 = vpop.f32.mrb[0].mxu0
      %v907 = vadd.f32 %v791, %v906
      %v908 = vpop.f32.mrb[0].mxu0
      %v909 = vpop.f32.mrb[0].mxu0
      %v910 = vadd.f32 %v791, %v909
      %v911 = vpop.f32.mrb[0].mxu0
      %912 = vmatprep.mubr.bf16.mxu0 0
      %913 = vmatmul.mubr.bf16.gmra.mrb[0].mxu0 %v824
      %v914 = vpop.f32.mrb[0].mxu0
      %v915 = vadd.f32 %v791, %v914
      %v916 = vpop.f32.mrb[0].mxu0
      %v917 = vpop.f32.mrb[0].mxu0
      %v918 = vadd.f32 %v791, %v917
      %v919 = vpop.f32.mrb[0].mxu0
      %920 = vmatprep.mubr.bf16.mxu0 0
      %921 = vmatmul.mubr.bf16.gmra.mrb[0].mxu0 %v827
      %v922 = vpop.f32.mrb[0].mxu0
      %v923 = vadd.f32 %v791, %v922
      %v924 = vpop.f32.mrb[0].mxu0
      %v925 = vpop.f32.mrb[0].mxu0
      %v926 = vadd.f32 %v791, %v925
      %v927 = vpop.f32.mrb[0].mxu0
      %928 = vmatprep.mubr.bf16.mxu0 0
      %929 = vmatmul.mubr.bf16.gmra.mrb[0].mxu0 %v830
      %v930 = vpop.f32.mrb[0].mxu0
      %v931 = vadd.f32 %v791, %v930
      %v932 = vpop.f32.mrb[0].mxu0
      %v933 = vpop.f32.mrb[0].mxu0
      %v934 = vadd.f32 %v791, %v933
      %v935 = vpop.f32.mrb[0].mxu0
      %936 = vdwg.mxu0
      %v937 = vld [vmem:[%s7] sm:$0x1]
      %v938 = vld [vmem:[%s8] sm:$0x1]
      %v939 = vsel %vm622, %v867, 0.0
      %940 = vadd.xlane.f32.xlu0 %v939
      %v941 = vpop.xlane.xlu0 %940
      %v942 = vsel %vm622, %v870, 0.0
      %943 = vadd.xlane.f32.xlu0 %v942
      %v944 = vpop.xlane.xlu0 %943
      %v945 = vsel %vm622, %v875, 0.0
      %946 = vadd.xlane.f32.xlu0 %v945
      %v947 = vpop.xlane.xlu0 %946
      %v948 = vsel %vm622, %v878, 0.0
      %949 = vadd.xlane.f32.xlu0 %v948
      %v950 = vpop.xlane.xlu0 %949
      %v951 = vsel %vm622, %v883, 0.0
      %952 = vadd.xlane.f32.xlu0 %v951
      %v953 = vpop.xlane.xlu0 %952
      %v954 = vsel %vm622, %v886, 0.0
      %955 = vadd.xlane.f32.xlu0 %v954
      %v956 = vpop.xlane.xlu0 %955
      %v957 = vsel %vm622, %v891, 0.0
      %958 = vadd.xlane.f32.xlu0 %v957
      %v959 = vpop.xlane.xlu0 %958
      %v960 = vsel %vm622, %v894, 0.0
      %961 = vadd.xlane.f32.xlu0 %v960
      %v962 = vpop.xlane.xlu0 %961
      %v963 = vsel %vm622, %v899, 0.0
      %964 = vadd.xlane.f32.xlu0 %v963
      %v965 = vpop.xlane.xlu0 %964
      %v966 = vsel %vm622, %v902, 0.0
      %967 = vadd.xlane.f32.xlu0 %v966
      %v968 = vpop.xlane.xlu0 %967
      %v969 = vsel %vm622, %v907, 0.0
      %970 = vadd.xlane.f32.xlu0 %v969
      %v971 = vpop.xlane.xlu0 %970
      %v972 = vsel %vm622, %v910, 0.0
      %973 = vadd.xlane.f32.xlu0 %v972
      %v974 = vpop.xlane.xlu0 %973
      %v975 = vsel %vm622, %v915, 0.0
      %976 = vadd.xlane.f32.xlu0 %v975
      %v977 = vpop.xlane.xlu0 %976
      %v978 = vsel %vm622, %v918, 0.0
      %979 = vadd.xlane.f32.xlu0 %v978
      %v980 = vpop.xlane.xlu0 %979
      %v981 = vsel %vm622, %v923, 0.0
      %982 = vadd.xlane.f32.xlu0 %v981
      %v983 = vpop.xlane.xlu0 %982
      %v984 = vsel %vm622, %v926, 0.0
      %985 = vadd.xlane.f32.xlu0 %v984
      %v986 = vpop.xlane.xlu0 %985
      %v987 = vsel %vm622, %v931, 0.0
      %988 = vadd.xlane.f32.xlu0 %v987
      %v989 = vpop.xlane.xlu0 %988
      %v990 = vsel %vm622, %v934, 0.0
      %991 = vadd.xlane.f32.xlu0 %v990
      %v992 = vpop.xlane.xlu0 %991
      %v993 = vrcp.pop 32.0
      %v994 = vmul.f32 %v941, %v993
      %v995 = vmul.f32 %v944, %v993
      %v996 = vmul.f32 %v947, %v993
      %v997 = vmul.f32 %v950, %v993
      %v998 = vmul.f32 %v953, %v993
      %v999 = vmul.f32 %v956, %v993
      %v1000 = vmul.f32 %v959, %v993
      %v1001 = vmul.f32 %v962, %v993
      %v1002 = vmul.f32 %v965, %v993
      %v1003 = vmul.f32 %v968, %v993
      %v1004 = vmul.f32 %v971, %v993
      %v1005 = vmul.f32 %v974, %v993
      %v1006 = vmul.f32 %v977, %v993
      %v1007 = vmul.f32 %v980, %v993
      %v1008 = vmul.f32 %v983, %v993
      %v1009 = vmul.f32 %v986, %v993
      %v1010 = vmul.f32 %v989, %v993
      %v1011 = vmul.f32 %v992, %v993
      %v1012 = vsub.f32 %v867, %v994
      %v1013 = vsub.f32 %v870, %v995
      %v1014 = vsub.f32 %v875, %v996
      %v1015 = vsub.f32 %v878, %v997
      %v1016 = vsub.f32 %v883, %v998
      %v1017 = vsub.f32 %v886, %v999
      %v1018 = vsub.f32 %v891, %v1000
      %v1019 = vsub.f32 %v894, %v1001
      %v1020 = vsub.f32 %v899, %v1002
      %v1021 = vsub.f32 %v902, %v1003
      %v1022 = vsub.f32 %v907, %v1004
      %v1023 = vsub.f32 %v910, %v1005
      %v1024 = vsub.f32 %v915, %v1006
      %v1025 = vsub.f32 %v918, %v1007
      %v1026 = vsub.f32 %v923, %v1008
      %v1027 = vsub.f32 %v926, %v1009
      %v1028 = vsub.f32 %v931, %v1010
      %v1029 = vsub.f32 %v934, %v1011
      %v1030 = vmul.f32 %v1012, %v1012
      %v1031 = vmul.f32 %v1013, %v1013
      %v1032 = vmul.f32 %v1014, %v1014
      %v1033 = vmul.f32 %v1015, %v1015
      %v1034 = vmul.f32 %v1016, %v1016
      %v1035 = vmul.f32 %v1017, %v1017
      %v1036 = vmul.f32 %v1018, %v1018
      %v1037 = vmul.f32 %v1019, %v1019
      %v1038 = vmul.f32 %v1020, %v1020
      %v1039 = vmul.f32 %v1021, %v1021
      %v1040 = vmul.f32 %v1022, %v1022
      %v1041 = vmul.f32 %v1023, %v1023
      %v1042 = vmul.f32 %v1024, %v1024
      %v1043 = vmul.f32 %v1025, %v1025
      %v1044 = vmul.f32 %v1026, %v1026
      %v1045 = vmul.f32 %v1027, %v1027
      %v1046 = vmul.f32 %v1028, %v1028
      %v1047 = vmul.f32 %v1029, %v1029
      %v1048 = vsel %vm622, %v1030, 0.0
      %1049 = vadd.xlane.f32.xlu0 %v1048
      %v1050 = vpop.xlane.xlu0 %1049
      %v1051 = vsel %vm622, %v1031, 0.0
      %1052 = vadd.xlane.f32.xlu0 %v1051
      %v1053 = vpop.xlane.xlu0 %1052
      %v1054 = vsel %vm622, %v1032, 0.0
      %1055 = vadd.xlane.f32.xlu0 %v1054
      %v1056 = vpop.xlane.xlu0 %1055
      %v1057 = vsel %vm622, %v1033, 0.0
      %1058 = vadd.xlane.f32.xlu0 %v1057
      %v1059 = vpop.xlane.xlu0 %1058
      %v1060 = vsel %vm622, %v1034, 0.0
      %1061 = vadd.xlane.f32.xlu0 %v1060
      %v1062 = vpop.xlane.xlu0 %1061
      %v1063 = vsel %vm622, %v1035, 0.0
      %1064 = vadd.xlane.f32.xlu0 %v1063
      %v1065 = vpop.xlane.xlu0 %1064
      %v1066 = vsel %vm622, %v1036, 0.0
      %1067 = vadd.xlane.f32.xlu0 %v1066
      %v1068 = vpop.xlane.xlu0 %1067
      %v1069 = vsel %vm622, %v1037, 0.0
      %1070 = vadd.xlane.f32.xlu0 %v1069
      %v1071 = vpop.xlane.xlu0 %1070
      %v1072 = vsel %vm622, %v1038, 0.0
      %1073 = vadd.xlane.f32.xlu0 %v1072
      %v1074 = vpop.xlane.xlu0 %1073
      %v1075 = vsel %vm622, %v1039, 0.0
      %1076 = vadd.xlane.f32.xlu0 %v1075
      %v1077 = vpop.xlane.xlu0 %1076
      %v1078 = vsel %vm622, %v1040, 0.0
      %1079 = vadd.xlane.f32.xlu0 %v1078
      %v1080 = vpop.xlane.xlu0 %1079
      %v1081 = vsel %vm622, %v1041, 0.0
      %1082 = vadd.xlane.f32.xlu0 %v1081
      %v1083 = vpop.xlane.xlu0 %1082
      %v1084 = vsel %vm622, %v1042, 0.0
      %1085 = vadd.xlane.f32.xlu0 %v1084
      %v1086 = vpop.xlane.xlu0 %1085
      %v1087 = vsel %vm622, %v1043, 0.0
      %1088 = vadd.xlane.f32.xlu0 %v1087
      %v1089 = vpop.xlane.xlu0 %1088
      %v1090 = vsel %vm622, %v1044, 0.0
      %1091 = vadd.xlane.f32.xlu0 %v1090
      %v1092 = vpop.xlane.xlu0 %1091
      %v1093 = vsel %vm622, %v1045, 0.0
      %1094 = vadd.xlane.f32.xlu0 %v1093
      %v1095 = vpop.xlane.xlu0 %1094
      %v1096 = vsel %vm622, %v1046, 0.0
      %1097 = vadd.xlane.f32.xlu0 %v1096
      %v1098 = vpop.xlane.xlu0 %1097
      %v1099 = vsel %vm622, %v1047, 0.0
      %1100 = vadd.xlane.f32.xlu0 %v1099
      %v1101 = vpop.xlane.xlu0 %1100
      %v1102 = vmul.f32 %v1050, %v993
      %v1103 = vmul.f32 %v1053, %v993
      %v1104 = vmul.f32 %v1056, %v993
      %v1105 = vmul.f32 %v1059, %v993
      %v1106 = vmul.f32 %v1062, %v993
      %v1107 = vmul.f32 %v1065, %v993
      %v1108 = vmul.f32 %v1068, %v993
      %v1109 = vmul.f32 %v1071, %v993
      %v1110 = vmul.f32 %v1074, %v993
      %v1111 = vmul.f32 %v1077, %v993
      %v1112 = vmul.f32 %v1080, %v993
      %v1113 = vmul.f32 %v1083, %v993
      %v1114 = vmul.f32 %v1086, %v993
      %v1115 = vmul.f32 %v1089, %v993
      %v1116 = vmul.f32 %v1092, %v993
      %v1117 = vmul.f32 %v1095, %v993
      %v1118 = vmul.f32 %v1098, %v993
      %v1119 = vmul.f32 %v1101, %v993
      %v1120 = vadd.f32 %v1102, 1e-05
      %v1121 = vadd.f32 %v1103, 1e-05
      %v1122 = vadd.f32 %v1104, 1e-05
      %v1123 = vadd.f32 %v1105, 1e-05
      %v1124 = vadd.f32 %v1106, 1e-05
      %v1125 = vadd.f32 %v1107, 1e-05
      %v1126 = vadd.f32 %v1108, 1e-05
      %v1127 = vadd.f32 %v1109, 1e-05
      %v1128 = vadd.f32 %v1110, 1e-05
      %v1129 = vadd.f32 %v1111, 1e-05
      %v1130 = vadd.f32 %v1112, 1e-05
      %v1131 = vadd.f32 %v1113, 1e-05
      %v1132 = vadd.f32 %v1114, 1e-05
      %v1133 = vadd.f32 %v1115, 1e-05
      %v1134 = vadd.f32 %v1116, 1e-05
      %v1135 = vadd.f32 %v1117, 1e-05
      %v1136 = vadd.f32 %v1118, 1e-05
      %v1137 = vadd.f32 %v1119, 1e-05
      %v1138 = vrsqrt.pop %v1120
      %v1139 = vrsqrt.pop %v1121
      %v1140 = vrsqrt.pop %v1122
      %v1141 = vrsqrt.pop %v1123
      %v1142 = vrsqrt.pop %v1124
      %v1143 = vrsqrt.pop %v1125
      %v1144 = vrsqrt.pop %v1126
      %v1145 = vrsqrt.pop %v1127
      %v1146 = vrsqrt.pop %v1128
      %v1147 = vrsqrt.pop %v1129
      %v1148 = vrsqrt.pop %v1130
      %v1149 = vrsqrt.pop %v1131
      %v1150 = vrsqrt.pop %v1132
      %v1151 = vrsqrt.pop %v1133
      %v1152 = vrsqrt.pop %v1134
      %v1153 = vrsqrt.pop %v1135
      %v1154 = vrsqrt.pop %v1136
      %v1155 = vrsqrt.pop %v1137
      %v1156 = vmul.f32 %v1012, %v1138
      %v1157 = vmul.f32 %v1013, %v1139
      %v1158 = vmul.f32 %v1014, %v1140
      %v1159 = vmul.f32 %v1015, %v1141
      %v1160 = vmul.f32 %v1016, %v1142
      %v1161 = vmul.f32 %v1017, %v1143
      %v1162 = vmul.f32 %v1018, %v1144
      %v1163 = vmul.f32 %v1019, %v1145
      %v1164 = vmul.f32 %v1020, %v1146
      %v1165 = vmul.f32 %v1021, %v1147
      %v1166 = vmul.f32 %v1022, %v1148
      %v1167 = vmul.f32 %v1023, %v1149
      %v1168 = vmul.f32 %v1024, %v1150
      %v1169 = vmul.f32 %v1025, %v1151
      %v1170 = vmul.f32 %v1026, %v1152
      %v1171 = vmul.f32 %v1027, %v1153
      %v1172 = vmul.f32 %v1028, %v1154
      %v1173 = vmul.f32 %v1029, %v1155
      %v1175 = vlaneseq
      %v1176 = vshrl.u32 %v1175, 7
      %v1177 = vsub.s32 0, %v1176
      %v1178 = vrot.slane %v937, %v1177
      %v1180 = vmul.f32 %v1156, %v1178
      %v1181 = vmul.f32 %v1157, %v1178
      %v1182 = vmul.f32 %v1158, %v1178
      %v1183 = vmul.f32 %v1159, %v1178
      %v1184 = vmul.f32 %v1160, %v1178
      %v1185 = vmul.f32 %v1161, %v1178
      %v1186 = vmul.f32 %v1162, %v1178
      %v1187 = vmul.f32 %v1163, %v1178
      %v1188 = vmul.f32 %v1164, %v1178
      %v1189 = vmul.f32 %v1165, %v1178
      %v1190 = vmul.f32 %v1166, %v1178
      %v1191 = vmul.f32 %v1167, %v1178
      %v1192 = vmul.f32 %v1168, %v1178
      %v1193 = vmul.f32 %v1169, %v1178
      %v1194 = vmul.f32 %v1170, %v1178
      %v1195 = vmul.f32 %v1171, %v1178
      %v1196 = vmul.f32 %v1172, %v1178
      %v1197 = vmul.f32 %v1173, %v1178
      %v1199 = vlaneseq
      %v1200 = vshrl.u32 %v1199, 7
      %v1201 = vsub.s32 0, %v1200
      %v1202 = vrot.slane %v938, %v1201
      %v1204 = vadd.f32 %v1180, %v1202
      %v1205 = vadd.f32 %v1181, %v1202
      %v1206 = vadd.f32 %v1182, %v1202
      %v1207 = vadd.f32 %v1183, %v1202
      %v1208 = vadd.f32 %v1184, %v1202
      %v1209 = vadd.f32 %v1185, %v1202
      %v1210 = vadd.f32 %v1186, %v1202
      %v1211 = vadd.f32 %v1187, %v1202
      %v1212 = vadd.f32 %v1188, %v1202
      %v1213 = vadd.f32 %v1189, %v1202
      %v1214 = vadd.f32 %v1190, %v1202
      %v1215 = vadd.f32 %v1191, %v1202
      %v1216 = vadd.f32 %v1192, %v1202
      %v1217 = vadd.f32 %v1193, %v1202
      %v1218 = vadd.f32 %v1194, %v1202
      %v1219 = vadd.f32 %v1195, %v1202
      %v1220 = vadd.f32 %v1196, %v1202
      %v1221 = vadd.f32 %v1197, %v1202
      %v1222 = vpack.c.bf16 %v1205, %v1204
      %v1223 = vpack.c.bf16 %v1207, %v1206
      %v1224 = vpack.c.bf16 %v1209, %v1208
      %v1225 = vpack.c.bf16 %v1211, %v1210
      %v1226 = vpack.c.bf16 %v1213, %v1212
      %v1227 = vpack.c.bf16 %v1215, %v1214
      %v1228 = vpack.c.bf16 %v1217, %v1216
      %v1229 = vpack.c.bf16 %v1219, %v1218
      %v1230 = vpack.c.bf16 %v1221, %v1220
      %v1240 = vunpack.c.l.b16 %v1222
      %v1241 = vunpack.c.h.b16 %v1222
      %v1242 = vunpack.c.l.b16 %v1223
      %v1243 = vunpack.c.h.b16 %v1223
      %v1244 = vunpack.c.l.b16 %v1224
      %v1245 = vunpack.c.h.b16 %v1224
      %v1246 = vunpack.c.l.b16 %v1225
      %v1247 = vunpack.c.h.b16 %v1225
      %v1248 = vunpack.c.l.b16 %v1226
      %v1249 = vunpack.c.h.b16 %v1226
      %v1250 = vunpack.c.l.b16 %v1227
      %v1251 = vunpack.c.h.b16 %v1227
      %v1252 = vunpack.c.l.b16 %v1228
      %v1253 = vunpack.c.h.b16 %v1228
      %v1254 = vunpack.c.l.b16 %v1229
      %v1255 = vunpack.c.h.b16 %v1229
      %v1256 = vunpack.c.l.b16 %v1230
      %v1257 = vunpack.c.h.b16 %v1230
      %v1258 = vpack.c.b16 %v1240, %v1240
      %v1259 = vpack.c.b16 %v1241, %v1241
      %v1260 = vpack.c.b16 %v1242, %v1242
      %v1261 = vpack.c.b16 %v1243, %v1243
      %v1262 = vpack.c.b16 %v1244, %v1244
      %v1263 = vpack.c.b16 %v1245, %v1245
      %v1264 = vpack.c.b16 %v1246, %v1246
      %v1265 = vpack.c.b16 %v1247, %v1247
      %v1266 = vpack.c.b16 %v1248, %v1248
      %v1267 = vpack.c.b16 %v1249, %v1249
      %v1268 = vpack.c.b16 %v1250, %v1250
      %v1269 = vpack.c.b16 %v1251, %v1251
      %v1270 = vpack.c.b16 %v1252, %v1252
      %v1271 = vpack.c.b16 %v1253, %v1253
      %v1272 = vpack.c.b16 %v1254, %v1254
      %v1273 = vpack.c.b16 %v1255, %v1255
      %v1274 = vpack.c.b16 %v1256, %v1256
      %v1275 = vpack.c.b16 %v1257, %v1257
      %vm1294 = vcmask 257024
      %1295 = vst.msk [vmem:[%s334] sm:$0xf] %vm1294, %v1258
      %1296 = vst.msk [vmem:[%s334 + $0x4] sm:$0xf] %vm1294, %v1259
      %1297 = vst.msk [vmem:[%s334 + $0x8] sm:$0xf] %vm1294, %v1260
      %1298 = vst.msk [vmem:[%s334 + $0xc] sm:$0xf] %vm1294, %v1261
      %1299 = vst.msk [vmem:[%s334 + $0x10] sm:$0xf] %vm1294, %v1262
      %1300 = vst.msk [vmem:[%s334 + $0x14] sm:$0xf] %vm1294, %v1263
      %1301 = vst.msk [vmem:[%s334 + $0x18] sm:$0xf] %vm1294, %v1264
      %1302 = vst.msk [vmem:[%s334 + $0x1c] sm:$0xf] %vm1294, %v1265
      %1303 = vst.msk [vmem:[%s334 + $0x20] sm:$0xf] %vm1294, %v1266
      %1304 = vst.msk [vmem:[%s334 + $0x24] sm:$0xf] %vm1294, %v1267
      %1305 = vst.msk [vmem:[%s334 + $0x28] sm:$0xf] %vm1294, %v1268
      %1306 = vst.msk [vmem:[%s334 + $0x2c] sm:$0xf] %vm1294, %v1269
      %1307 = vst.msk [vmem:[%s334 + $0x30] sm:$0xf] %vm1294, %v1270
      %1308 = vst.msk [vmem:[%s334 + $0x34] sm:$0xf] %vm1294, %v1271
      %1309 = vst.msk [vmem:[%s334 + $0x38] sm:$0xf] %vm1294, %v1272
      %1310 = vst.msk [vmem:[%s334 + $0x3c] sm:$0xf] %vm1294, %v1273
      %1311 = vst.msk [vmem:[%s334 + $0x40] sm:$0xf] %vm1294, %v1274
      %1312 = vst.msk [vmem:[%s334 + $0x44] sm:$0xf] %vm1294, %v1275
      %s1313 = smul.u32 18, %s20
      %p1314 = scmp.lt.s32.totalorder %s1313, 35
      %s1315 = scalar_select %p1314, %s1313, 35
      %s1316 = smul.addr %s1315, 4
      %s1317 = scalar_lea.vmem %s9, %s1316
      // Predicated region
      $region57: #{tpu_custom_call.1} parent=55 // pred_check
        %p1318 = pneg %p232
      $region58: #{tpu_custom_call.1} parent=55 // pred_check_branch
        %1320 = sbr.rel (%p1318) target = $region60
      $region59: #{tpu_custom_call.1} parent=55 // pred_region
        %s1321 = smul.u32 18, %s20
      $region60: #{tpu_custom_call.1} parent=55 // pred_fallthru
        _
    $region56: #{tpu_custom_call.1} parent=5 // pred_fallthru
      _
    %p1322 = scmp.le.s32.totalorder 2, %s15
    // Predicated region
    $region61: #{tpu_custom_call.1} parent=5 // pred_check
      %p1323 = pneg %p1322
    $region62: #{tpu_custom_call.1} parent=5 // pred_check_branch
      %1325 = sbr.rel (%p1323) target = $region64
    $region63: #{tpu_custom_call.1} parent=5 // pred_region
      %s1326 = ssub.s32 %s15, 2
      // Predicated region
      $region65: #{tpu_custom_call.1} parent=63 // pred_check
        %p1327 = pneg %p238
      $region66: #{tpu_custom_call.1} parent=63 // pred_check_branch
        %1329 = sbr.rel (%p1327) target = $region68
      $region67: #{tpu_custom_call.1} parent=63 // pred_region
        %s1330 = smul.u32 18, %s21
        %p1331 = scmp.lt.s32.totalorder %s1330, 35
        %s1332 = scalar_select %p1331, %s1330, 35
        %s1333 = smul.addr %s1332, 4
        %s1334 = scalar_lea.vmem %s9, %s1333
      $region68: #{tpu_custom_call.1} parent=63 // pred_fallthru
        _
    $region64: #{tpu_custom_call.1} parent=5 // pred_fallthru
      _
  $region6: #{tpu_custom_call.1} parent=0 // loop_footer
    %s19 = sadd.s32 1, %s15
  $region7: #{tpu_custom_call.1} parent=0 // loop_footer_branch
    %14 = sbr.rel target = $region3
  $region8: #{tpu_custom_call.1} parent=0 // loop_exit
    _

</llo_original>
